<compile_context>
chip_gen: v7x
topology: tpu7x:2x2x1
jax: 0.10.0
libtpu: 0.0.40
codegen_flags: <defaults>
</compile_context>

<pallas_src>
import numpy as np
import jax
import jax.numpy as jnp
from jax.experimental import pallas as pl
from jax.experimental.pallas import tpu as pltpu

BN_EPS = 1e-5
LANE = 128          # hidden feature dims are zero-padded to this inside slabs
NUM_LAYERS = 10     # after fusing fc21/fc22 into one head layer
HEAD_IDX = 4        # index of the fused mu|logvar head in the layer order
BIAS_ROWS = 16      # sublane-aligned rows in the bias slab (>= NUM_LAYERS)


def _round_up(v, m):
    return (v + m - 1) // m * m


def _cdiv(a, b):
    return -(-a // b)


# ---------------------------------------------------------------------------
# Kernel: the whole MLP for one batch tile, all weights resident in VMEM.
# ---------------------------------------------------------------------------
def make_kernel(num_layers, head_idx, k0, d_in, head_w):
    def kernel(x_ref, w_ref, b_ref, recon_ref, head_ref):
        # x_ref:   (bn, k0)   f32  lane-narrow input tile (k0 = round_up(d_in,8))
        # w_ref:   (L,128,128) bf16 resident folded-weight slab
        # b_ref:   (16, 128)  f32  resident folded-bias slab
        h = x_ref[...]
        for li in range(num_layers):                       # static unroll
            w = w_ref[0, 0:k0, :] if li == 0 else w_ref[li]
            b = b_ref[li:li + 1, :]                        # (1, 128) f32
            h = jnp.dot(h.astype(jnp.bfloat16), w,
                        preferred_element_type=jnp.float32) + b
            if li == head_idx:
                # Fused latent head (mu | logvar), no ReLU.  Store immediately
                # so no second (bn,128) value stays live across the decoder.
                # z = mu: the logvar lanes feed all-zero rows of the fc3 block.
                head_ref[...] = h[:, 0:head_w]
            elif li != num_layers - 1:
                h = jnp.maximum(h, 0.0)                    # ReLU (f32)
        recon_ref[...] = h[:, 0:d_in]                      # reconstruction
    return kernel


# ---------------------------------------------------------------------------
# Wrapper: batch grid, resident parameter slabs, narrow outputs.
# ---------------------------------------------------------------------------
def _forward_impl(x, w_slab, b_slab, *, d_in, latent_dim, block_n, use_buffered):
    n = x.shape[0]
    num_layers = w_slab.shape[0]
    k0 = _round_up(d_in, 8)
    head_w = _round_up(2 * latent_dim, 8)

    # Tile-size selection: big tiles amortize per-step overhead; force >= 2
    # grid steps when the batch allows it so both v7x TensorCores get work.
    bn = _round_up(min(block_n, _round_up(n, 8)), 8)
    if _round_up(n, 8) > 8 and _round_up(n, bn) // bn < 2:
        bn = _round_up(_cdiv(n, 2), 8)
    n_pad = _round_up(n, bn)
    grid = (n_pad // bn,)

    flops = 2 * n_pad * (k0 * LANE + (num_layers - 1) * LANE * LANE)
    bytes_accessed = int(n_pad * k0 * 4
                         + w_slab.size * w_slab.dtype.itemsize
                         + b_slab.size * 4
                         + n_pad * (d_in + head_w) * 4)

    # Resident (constant block-index) parameter slabs: single-buffered.
    resident = dict(pipeline_mode=pl.Buffered(1)) if use_buffered else {}
    w_spec = pl.BlockSpec((num_layers, LANE, LANE), lambda i: (0, 0, 0), **resident)
    b_spec = pl.BlockSpec((BIAS_ROWS, LANE), lambda i: (0, 0), **resident)

    call = pl.pallas_call(
        make_kernel(num_layers, HEAD_IDX, k0, d_in, head_w),
        out_shape=(jax.ShapeDtypeStruct((n_pad, d_in), jnp.float32),
                   jax.ShapeDtypeStruct((n_pad, head_w), jnp.float32)),
        grid_spec=pltpu.PrefetchScalarGridSpec(
            num_scalar_prefetch=0,
            grid=grid,
            in_specs=[
                pl.BlockSpec((bn, k0), lambda i: (i, 0)),   # x tile (narrow)
                w_spec,                                     # weights (resident)
                b_spec,                                     # biases  (resident)
            ],
            out_specs=[
                pl.BlockSpec((bn, d_in), lambda i: (i, 0)),    # recon
                pl.BlockSpec((bn, head_w), lambda i: (i, 0)),  # mu|logvar
            ],
        ),
        compiler_params=pltpu.CompilerParams(dimension_semantics=("parallel",)),
        cost_estimate=pl.CostEstimate(flops=flops, transcendentals=0,
                                      bytes_accessed=bytes_accessed),
    )

    def _fwd(xx, ww, bb):
        # Batch/8-lane pad fused under the SAME jit as the pallas_call: no
        # separate materialized 128-lane zero slab in HBM.
        x_pad = jnp.zeros((n_pad, k0), jnp.float32)
        x_pad = x_pad.at[:n, :d_in].set(xx.astype(jnp.float32))
        recon_p, head_p = call(x_pad, ww, bb)
        return (recon_p[:n, :],
                head_p[:n, :latent_dim],
                head_p[:n, latent_dim:2 * latent_dim])

    return jax.jit(_fwd)(x, w_slab, b_slab)


def autoencoder_forward(x, w_slab, b_slab, *, d_in, latent_dim, block_n=512):
    try:
        out = _forward_impl(x, w_slab, b_slab, d_in=d_in, latent_dim=latent_dim,
                            block_n=block_n, use_buffered=True)
        jax.block_until_ready(out)
        return out
    except Exception:
        # pl.Buffered(1) single-buffering not supported by this jax version —
        # fall back to default double-buffered resident slabs (still tiny).
        return _forward_impl(x, w_slab, b_slab, d_in=d_in, latent_dim=latent_dim,
                             block_n=block_n, use_buffered=False)


# ---------------------------------------------------------------------------
# Deterministic parameter construction (PyTorch-equivalent init, plain JAX).
# ---------------------------------------------------------------------------
def _linear_init(key, fan_in, fan_out):
    kw, kb = jax.random.split(key)
    bound = 1.0 / np.sqrt(fan_in)
    w = jax.random.uniform(kw, (fan_in, fan_out), jnp.float32, -bound, bound)
    b = jax.random.uniform(kb, (fan_out,), jnp.float32, -bound, bound)
    return w, b


def _bn_init(key, feat):
    # Eval-mode BatchNorm1d with fresh running stats (mean=0, var=1),
    # expressed as per-feature affine y = x * scale + shift.
    kg, kb = jax.random.split(key)
    gamma = 1.0 + 0.1 * jax.random.normal(kg, (feat,), jnp.float32)
    beta = 0.1 * jax.random.normal(kb, (feat,), jnp.float32)
    running_mean = jnp.zeros((feat,), jnp.float32)
    running_var = jnp.ones((feat,), jnp.float32)
    scale = gamma / jnp.sqrt(running_var + BN_EPS)
    shift = beta - running_mean * scale
    return scale, shift


def build_layers(key, d_in, h=50, h2=12, latent=3):
    plan = [
        ("linear1", d_in, h, True),
        ("linear2", h, h2, True),
        ("linear3", h2, h2, True),
        ("fc1", h2, latent, True),
        ("fc21", latent, latent, False),
        ("fc22", latent, latent, False),
        ("fc3", latent, latent, True),
        ("fc4", latent, h2, True),
        ("linear4", h2, h2, True),
        ("linear5", h2, h, True),
        ("linear6", h, d_in, True),
    ]
    keys = jax.random.split(key, 2 * len(plan))
    layers = []
    for idx, (name, fi, fo, has_bn) in enumerate(plan):
        w, b = _linear_init(keys[2 * idx], fi, fo)
        bn = _bn_init(keys[2 * idx + 1], fo) if has_bn else None
        layers.append((name, w, b, bn))
    return layers


def pack_params(layers, latent_dim):
    """Fold eval-mode BN into the Linears, fuse fc21/fc22, pack into slabs.

    Returns (w_slab bf16 [L,128,128], b_slab f32 [16,128]).
    """
    by_name = {name: (w, b, bn) for name, w, b, bn in layers}
    order = ["linear1", "linear2", "linear3", "fc1", "HEAD",
             "fc3", "fc4", "linear4", "linear5", "linear6"]
    assert len(order) == NUM_LAYERS and order[HEAD_IDX] == "HEAD"

    w_slab = np.zeros((NUM_LAYERS, LANE, LANE), np.float32)
    b_slab = np.zeros((BIAS_ROWS, LANE), np.float32)
    for li, name in enumerate(order):
        if name == "HEAD":
            w21, b21, _ = by_name["fc21"]
            w22, b22, _ = by_name["fc22"]
            fi = w21.shape[0]
            w_slab[li, :fi, :latent_dim] = np.asarray(w21)
            w_slab[li, :fi, latent_dim:2 * latent_dim] = np.asarray(w22)
            b_slab[li, :latent_dim] = np.asarray(b21)
            b_slab[li, latent_dim:2 * latent_dim] = np.asarray(b22)
        else:
            w, b, bn = by_name[name]
            fi, fo = w.shape
            assert fi <= LANE and fo <= LANE
            if bn is not None:
                scale, shift = bn
                w = w * scale[None, :]
                b = b * scale + shift
            w_slab[li, :fi, :fo] = np.asarray(w)
            b_slab[li, :fo] = np.asarray(b)

    # Padding invariants the fused head relies on (per review):
    #  - head lanes beyond 2*latent stay exactly zero,
    #  - logvar lanes (latent:2*latent) must hit all-zero rows of the fc3 block
    #    so that z = mu.
    assert not np.any(w_slab[HEAD_IDX, :, 2 * latent_dim:])
    assert not np.any(b_slab[HEAD_IDX, 2 * latent_dim:])
    assert not np.any(w_slab[HEAD_IDX + 1, latent_dim:, :])

    return jnp.asarray(w_slab, dtype=jnp.bfloat16), jnp.asarray(b_slab)


# ---------------------------------------------------------------------------
# References for verification.
# ---------------------------------------------------------------------------
def slab_reference(x, w_slab, b_slab, *, d_in, latent_dim):
    """Plain-JAX mirror of the kernel math (same packed bf16 slabs)."""
    h = x.astype(jnp.float32)
    head = None
    for li in range(NUM_LAYERS):
        w = w_slab[li, :h.shape[1], :]
        h = jnp.dot(h.astype(jnp.bfloat16), w,
                    preferred_element_type=jnp.float32) + b_slab[li:li + 1, :]
        if li == HEAD_IDX:
            head = h
        elif li != NUM_LAYERS - 1:
            h = jnp.maximum(h, 0.0)
    return h[:, :d_in], head[:, :latent_dim], head[:, latent_dim:2 * latent_dim]


def reference_forward(x, layers):
    """Original f32, unfused, explicit-BN eval-mode forward."""
    by_name = {name: (w, b, bn) for name, w, b, bn in layers}

    def lin(name, t):
        w, b, bn = by_name[name]
        y = t @ w + b
        if bn is not None:
            scale, shift = bn
            y = y * scale + shift
        return y

    relu = lambda t: jnp.maximum(t, 0.0)
    lin1 = relu(lin("linear1", x))
    lin2 = relu(lin("linear2", lin1))
    lin3 = relu(lin("linear3", lin2))
    fc1 = relu(lin("fc1", lin3))
    mu = lin("fc21", fc1)
    logvar = lin("fc22", fc1)
    z = mu                                   # eval-mode reparameterize
    fc3 = relu(lin("fc3", z))
    fc4 = relu(lin("fc4", fc3))
    l4 = relu(lin("linear4", fc4))
    l5 = relu(lin("linear5", l4))
    recon = lin("linear6", l5)               # lin_bn6, no ReLU
    return recon, mu, logvar


if __name__ == "__main__":
    D_IN, H, H2, LATENT = 16, 50, 12, 3

    key = jax.random.PRNGKey(0)
    kx_small, kx_large, kp = jax.random.split(key, 3)

    layers = build_layers(kp, D_IN, H, H2, LATENT)
    w_slab, b_slab = pack_params(layers, LATENT)

    # Two batch sizes: tiny (single-tile) and one that exercises the
    # multi-step parallel grid + batch-padding path.
    for n, kx in ((8, kx_small), (300, kx_large)):
        x = jax.random.normal(kx, (n, D_IN), jnp.float32)

        recon, mu, logvar = autoencoder_forward(
            x, w_slab, b_slab, d_in=D_IN, latent_dim=LATENT, block_n=512)
        jax.block_until_ready((recon, mu, logvar))
        assert recon.shape == (n, D_IN)
        assert mu.shape == (n, LATENT) and logvar.shape == (n, LATENT)

        # Tight check vs a plain-JAX mirror of the exact kernel math
        # (verifies slab packing, BN fold, head fusion, indexing).
        s_recon, s_mu, s_logvar = slab_reference(
            x, w_slab, b_slab, d_in=D_IN, latent_dim=LATENT)
        for got, want in ((recon, s_recon), (mu, s_mu), (logvar, s_logvar)):
            np.testing.assert_allclose(np.asarray(got), np.asarray(want),
                                       rtol=3e-3, atol=1e-3)

        # Loose check vs the original f32 module semantics (bf16 weights are a
        # performance optimization; tolerances relaxed accordingly).
        f_recon, f_mu, f_logvar = reference_forward(x, layers)
        for got, want in ((recon, f_recon), (mu, f_mu), (logvar, f_logvar)):
            np.testing.assert_allclose(np.asarray(got), np.asarray(want),
                                       rtol=5e-2, atol=5e-2)

    print("KERNEL_OK")
</pallas_src>

<mosaic_0001>
module attributes {stable_mosaic.version = 11 : i64} {
  func.func @kernel(%arg0: i32, %arg1: memref<8x16xf32, #tpu.memory_space<vmem>>, %arg2: memref<10x128x128xbf16, #tpu.memory_space<vmem>>, %arg3: memref<16x128xf32, #tpu.memory_space<vmem>>, %arg4: memref<8x16xf32, #tpu.memory_space<vmem>>, %arg5: memref<8x8xf32, #tpu.memory_space<vmem>>) attributes {dimension_semantics = [#tpu.dimension_semantics<parallel>], iteration_bounds = array<i64: 1>, scalar_prefetch = 0 : i64, scratch_operands = 0 : i64, tpu.core_type = #tpu.core_type<tc>, window_params = [{transform_indices = @transform_0, window_bounds = array<i64: 8, 16>}, {pipeline_mode = #tpu.pipeline_mode<synchronous>, transform_indices = @transform_1, window_bounds = array<i64: 10, 128, 128>}, {pipeline_mode = #tpu.pipeline_mode<synchronous>, transform_indices = @transform_2, window_bounds = array<i64: 16, 128>}, {transform_indices = @transform_3, window_bounds = array<i64: 8, 16>}, {transform_indices = @transform_4, window_bounds = array<i64: 8, 8>}]} {
    %c0 = arith.constant 0 : index
    %c0_0 = arith.constant 0 : index
    %0 = vector.load %arg1[%c0, %c0_0] : memref<8x16xf32, #tpu.memory_space<vmem>>, vector<8x16xf32>
    %c0_1 = arith.constant 0 : index
    %c0_2 = arith.constant 0 : index
    %c0_3 = arith.constant 0 : index
    %1 = vector.load %arg2[%c0_1, %c0_2, %c0_3] : memref<10x128x128xbf16, #tpu.memory_space<vmem>>, vector<1x16x128xbf16>
    %2 = vector.shape_cast %1 : vector<1x16x128xbf16> to vector<16x128xbf16>
    %c0_4 = arith.constant 0 : index
    %c0_5 = arith.constant 0 : index
    %3 = vector.load %arg3[%c0_4, %c0_5] : memref<16x128xf32, #tpu.memory_space<vmem>>, vector<1x128xf32>
    %4 = arith.truncf %0 : vector<8x16xf32> to vector<8x16xbf16>
    %cst = arith.constant dense<0.000000e+00> : vector<8x128xf32>
    %5 = tpu.matmul %4, %2, %cst {dimension_numbers = #tpu.dot_dimension_numbers<[1], [0], [0], [1], [0, 0, 1, 1], [], []>} : vector<8x16xbf16>, vector<16x128xbf16>, vector<8x128xf32> -> vector<8x128xf32>
    %6 = vector.broadcast %3 : vector<1x128xf32> to vector<8x128xf32>
    %7 = arith.addf %5, %6 : vector<8x128xf32>
    %cst_6 = arith.constant 0.000000e+00 : f32
    %8 = vector.broadcast %cst_6 : f32 to vector<8x128xf32>
    %9 = arith.maximumf %7, %8 : vector<8x128xf32>
    %c1 = arith.constant 1 : index
    %c0_7 = arith.constant 0 : index
    %c0_8 = arith.constant 0 : index
    %10 = vector.load %arg2[%c1, %c0_7, %c0_8] : memref<10x128x128xbf16, #tpu.memory_space<vmem>>, vector<1x128x128xbf16>
    %11 = vector.shape_cast %10 : vector<1x128x128xbf16> to vector<128x128xbf16>
    %c1_9 = arith.constant 1 : index
    %c0_10 = arith.constant 0 : index
    %12 = vector.load %arg3[%c1_9, %c0_10] : memref<16x128xf32, #tpu.memory_space<vmem>>, vector<1x128xf32>
    %13 = arith.truncf %9 : vector<8x128xf32> to vector<8x128xbf16>
    %cst_11 = arith.constant dense<0.000000e+00> : vector<8x128xf32>
    %14 = tpu.matmul %13, %11, %cst_11 {dimension_numbers = #tpu.dot_dimension_numbers<[1], [0], [0], [1], [0, 0, 1, 1], [], []>} : vector<8x128xbf16>, vector<128x128xbf16>, vector<8x128xf32> -> vector<8x128xf32>
    %15 = vector.broadcast %12 : vector<1x128xf32> to vector<8x128xf32>
    %16 = arith.addf %14, %15 : vector<8x128xf32>
    %cst_12 = arith.constant 0.000000e+00 : f32
    %17 = vector.broadcast %cst_12 : f32 to vector<8x128xf32>
    %18 = arith.maximumf %16, %17 : vector<8x128xf32>
    %c2 = arith.constant 2 : index
    %c0_13 = arith.constant 0 : index
    %c0_14 = arith.constant 0 : index
    %19 = vector.load %arg2[%c2, %c0_13, %c0_14] : memref<10x128x128xbf16, #tpu.memory_space<vmem>>, vector<1x128x128xbf16>
    %20 = vector.shape_cast %19 : vector<1x128x128xbf16> to vector<128x128xbf16>
    %c2_15 = arith.constant 2 : index
    %c0_16 = arith.constant 0 : index
    %21 = vector.load %arg3[%c2_15, %c0_16] : memref<16x128xf32, #tpu.memory_space<vmem>>, vector<1x128xf32>
    %22 = arith.truncf %18 : vector<8x128xf32> to vector<8x128xbf16>
    %cst_17 = arith.constant dense<0.000000e+00> : vector<8x128xf32>
    %23 = tpu.matmul %22, %20, %cst_17 {dimension_numbers = #tpu.dot_dimension_numbers<[1], [0], [0], [1], [0, 0, 1, 1], [], []>} : vector<8x128xbf16>, vector<128x128xbf16>, vector<8x128xf32> -> vector<8x128xf32>
    %24 = vector.broadcast %21 : vector<1x128xf32> to vector<8x128xf32>
    %25 = arith.addf %23, %24 : vector<8x128xf32>
    %cst_18 = arith.constant 0.000000e+00 : f32
    %26 = vector.broadcast %cst_18 : f32 to vector<8x128xf32>
    %27 = arith.maximumf %25, %26 : vector<8x128xf32>
    %c3 = arith.constant 3 : index
    %c0_19 = arith.constant 0 : index
    %c0_20 = arith.constant 0 : index
    %28 = vector.load %arg2[%c3, %c0_19, %c0_20] : memref<10x128x128xbf16, #tpu.memory_space<vmem>>, vector<1x128x128xbf16>
    %29 = vector.shape_cast %28 : vector<1x128x128xbf16> to vector<128x128xbf16>
    %c3_21 = arith.constant 3 : index
    %c0_22 = arith.constant 0 : index
    %30 = vector.load %arg3[%c3_21, %c0_22] : memref<16x128xf32, #tpu.memory_space<vmem>>, vector<1x128xf32>
    %31 = arith.truncf %27 : vector<8x128xf32> to vector<8x128xbf16>
    %cst_23 = arith.constant dense<0.000000e+00> : vector<8x128xf32>
    %32 = tpu.matmul %31, %29, %cst_23 {dimension_numbers = #tpu.dot_dimension_numbers<[1], [0], [0], [1], [0, 0, 1, 1], [], []>} : vector<8x128xbf16>, vector<128x128xbf16>, vector<8x128xf32> -> vector<8x128xf32>
    %33 = vector.broadcast %30 : vector<1x128xf32> to vector<8x128xf32>
    %34 = arith.addf %32, %33 : vector<8x128xf32>
    %cst_24 = arith.constant 0.000000e+00 : f32
    %35 = vector.broadcast %cst_24 : f32 to vector<8x128xf32>
    %36 = arith.maximumf %34, %35 : vector<8x128xf32>
    %c4 = arith.constant 4 : index
    %c0_25 = arith.constant 0 : index
    %c0_26 = arith.constant 0 : index
    %37 = vector.load %arg2[%c4, %c0_25, %c0_26] : memref<10x128x128xbf16, #tpu.memory_space<vmem>>, vector<1x128x128xbf16>
    %38 = vector.shape_cast %37 : vector<1x128x128xbf16> to vector<128x128xbf16>
    %c4_27 = arith.constant 4 : index
    %c0_28 = arith.constant 0 : index
    %39 = vector.load %arg3[%c4_27, %c0_28] : memref<16x128xf32, #tpu.memory_space<vmem>>, vector<1x128xf32>
    %40 = arith.truncf %36 : vector<8x128xf32> to vector<8x128xbf16>
    %cst_29 = arith.constant dense<0.000000e+00> : vector<8x128xf32>
    %41 = tpu.matmul %40, %38, %cst_29 {dimension_numbers = #tpu.dot_dimension_numbers<[1], [0], [0], [1], [0, 0, 1, 1], [], []>} : vector<8x128xbf16>, vector<128x128xbf16>, vector<8x128xf32> -> vector<8x128xf32>
    %42 = vector.broadcast %39 : vector<1x128xf32> to vector<8x128xf32>
    %43 = arith.addf %41, %42 : vector<8x128xf32>
    %44 = vector.extract_strided_slice %43 {offsets = [0, 0], sizes = [8, 8], strides = [1, 1]} : vector<8x128xf32> to vector<8x8xf32>
    %c0_30 = arith.constant 0 : index
    %c0_31 = arith.constant 0 : index
    %45 = vector.load %arg5[%c0_30, %c0_31] : memref<8x8xf32, #tpu.memory_space<vmem>>, vector<8x8xf32>
    tpu.vector_store %arg5[%c0_30, %c0_31], %44 {strides = array<i32>} : memref<8x8xf32, #tpu.memory_space<vmem>>, vector<8x8xf32>,
    %c5 = arith.constant 5 : index
    %c0_32 = arith.constant 0 : index
    %c0_33 = arith.constant 0 : index
    %46 = vector.load %arg2[%c5, %c0_32, %c0_33] : memref<10x128x128xbf16, #tpu.memory_space<vmem>>, vector<1x128x128xbf16>
    %47 = vector.shape_cast %46 : vector<1x128x128xbf16> to vector<128x128xbf16>
    %c5_34 = arith.constant 5 : index
    %c0_35 = arith.constant 0 : index
    %48 = vector.load %arg3[%c5_34, %c0_35] : memref<16x128xf32, #tpu.memory_space<vmem>>, vector<1x128xf32>
    %49 = arith.truncf %43 : vector<8x128xf32> to vector<8x128xbf16>
    %cst_36 = arith.constant dense<0.000000e+00> : vector<8x128xf32>
    %50 = tpu.matmul %49, %47, %cst_36 {dimension_numbers = #tpu.dot_dimension_numbers<[1], [0], [0], [1], [0, 0, 1, 1], [], []>} : vector<8x128xbf16>, vector<128x128xbf16>, vector<8x128xf32> -> vector<8x128xf32>
    %51 = vector.broadcast %48 : vector<1x128xf32> to vector<8x128xf32>
    %52 = arith.addf %50, %51 : vector<8x128xf32>
    %cst_37 = arith.constant 0.000000e+00 : f32
    %53 = vector.broadcast %cst_37 : f32 to vector<8x128xf32>
    %54 = arith.maximumf %52, %53 : vector<8x128xf32>
    %c6 = arith.constant 6 : index
    %c0_38 = arith.constant 0 : index
    %c0_39 = arith.constant 0 : index
    %55 = vector.load %arg2[%c6, %c0_38, %c0_39] : memref<10x128x128xbf16, #tpu.memory_space<vmem>>, vector<1x128x128xbf16>
    %56 = vector.shape_cast %55 : vector<1x128x128xbf16> to vector<128x128xbf16>
    %c6_40 = arith.constant 6 : index
    %c0_41 = arith.constant 0 : index
    %57 = vector.load %arg3[%c6_40, %c0_41] : memref<16x128xf32, #tpu.memory_space<vmem>>, vector<1x128xf32>
    %58 = arith.truncf %54 : vector<8x128xf32> to vector<8x128xbf16>
    %cst_42 = arith.constant dense<0.000000e+00> : vector<8x128xf32>
    %59 = tpu.matmul %58, %56, %cst_42 {dimension_numbers = #tpu.dot_dimension_numbers<[1], [0], [0], [1], [0, 0, 1, 1], [], []>} : vector<8x128xbf16>, vector<128x128xbf16>, vector<8x128xf32> -> vector<8x128xf32>
    %60 = vector.broadcast %57 : vector<1x128xf32> to vector<8x128xf32>
    %61 = arith.addf %59, %60 : vector<8x128xf32>
    %cst_43 = arith.constant 0.000000e+00 : f32
    %62 = vector.broadcast %cst_43 : f32 to vector<8x128xf32>
    %63 = arith.maximumf %61, %62 : vector<8x128xf32>
    %c7 = arith.constant 7 : index
    %c0_44 = arith.constant 0 : index
    %c0_45 = arith.constant 0 : index
    %64 = vector.load %arg2[%c7, %c0_44, %c0_45] : memref<10x128x128xbf16, #tpu.memory_space<vmem>>, vector<1x128x128xbf16>
    %65 = vector.shape_cast %64 : vector<1x128x128xbf16> to vector<128x128xbf16>
    %c7_46 = arith.constant 7 : index
    %c0_47 = arith.constant 0 : index
    %66 = vector.load %arg3[%c7_46, %c0_47] : memref<16x128xf32, #tpu.memory_space<vmem>>, vector<1x128xf32>
    %67 = arith.truncf %63 : vector<8x128xf32> to vector<8x128xbf16>
    %cst_48 = arith.constant dense<0.000000e+00> : vector<8x128xf32>
    %68 = tpu.matmul %67, %65, %cst_48 {dimension_numbers = #tpu.dot_dimension_numbers<[1], [0], [0], [1], [0, 0, 1, 1], [], []>} : vector<8x128xbf16>, vector<128x128xbf16>, vector<8x128xf32> -> vector<8x128xf32>
    %69 = vector.broadcast %66 : vector<1x128xf32> to vector<8x128xf32>
    %70 = arith.addf %68, %69 : vector<8x128xf32>
    %cst_49 = arith.constant 0.000000e+00 : f32
    %71 = vector.broadcast %cst_49 : f32 to vector<8x128xf32>
    %72 = arith.maximumf %70, %71 : vector<8x128xf32>
    %c8 = arith.constant 8 : index
    %c0_50 = arith.constant 0 : index
    %c0_51 = arith.constant 0 : index
    %73 = vector.load %arg2[%c8, %c0_50, %c0_51] : memref<10x128x128xbf16, #tpu.memory_space<vmem>>, vector<1x128x128xbf16>
    %74 = vector.shape_cast %73 : vector<1x128x128xbf16> to vector<128x128xbf16>
    %c8_52 = arith.constant 8 : index
    %c0_53 = arith.constant 0 : index
    %75 = vector.load %arg3[%c8_52, %c0_53] : memref<16x128xf32, #tpu.memory_space<vmem>>, vector<1x128xf32>
    %76 = arith.truncf %72 : vector<8x128xf32> to vector<8x128xbf16>
    %cst_54 = arith.constant dense<0.000000e+00> : vector<8x128xf32>
    %77 = tpu.matmul %76, %74, %cst_54 {dimension_numbers = #tpu.dot_dimension_numbers<[1], [0], [0], [1], [0, 0, 1, 1], [], []>} : vector<8x128xbf16>, vector<128x128xbf16>, vector<8x128xf32> -> vector<8x128xf32>
    %78 = vector.broadcast %75 : vector<1x128xf32> to vector<8x128xf32>
    %79 = arith.addf %77, %78 : vector<8x128xf32>
    %cst_55 = arith.constant 0.000000e+00 : f32
    %80 = vector.broadcast %cst_55 : f32 to vector<8x128xf32>
    %81 = arith.maximumf %79, %80 : vector<8x128xf32>
    %c9 = arith.constant 9 : index
    %c0_56 = arith.constant 0 : index
    %c0_57 = arith.constant 0 : index
    %82 = vector.load %arg2[%c9, %c0_56, %c0_57] : memref<10x128x128xbf16, #tpu.memory_space<vmem>>, vector<1x128x128xbf16>
    %83 = vector.shape_cast %82 : vector<1x128x128xbf16> to vector<128x128xbf16>
    %c9_58 = arith.constant 9 : index
    %c0_59 = arith.constant 0 : index
    %84 = vector.load %arg3[%c9_58, %c0_59] : memref<16x128xf32, #tpu.memory_space<vmem>>, vector<1x128xf32>
    %85 = arith.truncf %81 : vector<8x128xf32> to vector<8x128xbf16>
    %cst_60 = arith.constant dense<0.000000e+00> : vector<8x128xf32>
    %86 = tpu.matmul %85, %83, %cst_60 {dimension_numbers = #tpu.dot_dimension_numbers<[1], [0], [0], [1], [0, 0, 1, 1], [], []>} : vector<8x128xbf16>, vector<128x128xbf16>, vector<8x128xf32> -> vector<8x128xf32>
    %87 = vector.broadcast %84 : vector<1x128xf32> to vector<8x128xf32>
    %88 = arith.addf %86, %87 : vector<8x128xf32>
    %89 = vector.extract_strided_slice %88 {offsets = [0, 0], sizes = [8, 16], strides = [1, 1]} : vector<8x128xf32> to vector<8x16xf32>
    %c0_61 = arith.constant 0 : index
    %c0_62 = arith.constant 0 : index
    %90 = vector.load %arg4[%c0_61, %c0_62] : memref<8x16xf32, #tpu.memory_space<vmem>>, vector<8x16xf32>
    tpu.vector_store %arg4[%c0_61, %c0_62], %89 {strides = array<i32>} : memref<8x16xf32, #tpu.memory_space<vmem>>, vector<8x16xf32>,
    return
  }
  func.func @transform_0(%arg0: i32) -> (i32, i32) {
    %c0_i32 = arith.constant 0 : i32
    %c0_i32_0 = arith.constant 0 : i32
    return %arg0, %c0_i32 : i32, i32
  }
  func.func @transform_1(%arg0: i32) -> (i32, i32, i32) {
    %c0_i32 = arith.constant 0 : i32
    %c0_i32_0 = arith.constant 0 : i32
    %c0_i32_1 = arith.constant 0 : i32
    %c0_i32_2 = arith.constant 0 : i32
    return %c0_i32, %c0_i32_0, %c0_i32_1 : i32, i32, i32
  }
  func.func @transform_2(%arg0: i32) -> (i32, i32) {
    %c0_i32 = arith.constant 0 : i32
    %c0_i32_0 = arith.constant 0 : i32
    %c0_i32_1 = arith.constant 0 : i32
    return %c0_i32, %c0_i32_0 : i32, i32
  }
  func.func @transform_3(%arg0: i32) -> (i32, i32) {
    %c0_i32 = arith.constant 0 : i32
    %c0_i32_0 = arith.constant 0 : i32
    return %arg0, %c0_i32 : i32, i32
  }
  func.func @transform_4(%arg0: i32) -> (i32, i32) {
    %c0_i32 = arith.constant 0 : i32
    %c0_i32_0 = arith.constant 0 : i32
    return %arg0, %c0_i32 : i32, i32
  }
}

module attributes {stable_mosaic.version = 11 : i64} {
  func.func @kernel(%arg0: i32, %arg1: memref<8x16xf32, #tpu.memory_space<vmem>>, %arg2: memref<10x128x128xbf16, #tpu.memory_space<vmem>>, %arg3: memref<16x128xf32, #tpu.memory_space<vmem>>, %arg4: memref<8x16xf32, #tpu.memory_space<vmem>>, %arg5: memref<8x8xf32, #tpu.memory_space<vmem>>) attributes {dimension_semantics = [#tpu.dimension_semantics<parallel>], iteration_bounds = array<i64: 1>, scalar_prefetch = 0 : i64, scratch_operands = 0 : i64, tpu.core_type = #tpu.core_type<tc>, window_params = [{transform_indices = @transform_0, window_bounds = array<i64: 8, 16>}, {pipeline_mode = #tpu.pipeline_mode<synchronous>, transform_indices = @transform_1, window_bounds = array<i64: 10, 128, 128>}, {pipeline_mode = #tpu.pipeline_mode<synchronous>, transform_indices = @transform_2, window_bounds = array<i64: 16, 128>}, {transform_indices = @transform_3, window_bounds = array<i64: 8, 16>}, {transform_indices = @transform_4, window_bounds = array<i64: 8, 8>}]} {
    %c0 = arith.constant 0 : index
    %c0_0 = arith.constant 0 : index
    %0 = vector.load %arg1[%c0, %c0_0] : memref<8x16xf32, #tpu.memory_space<vmem>>, vector<8x16xf32>
    %c0_1 = arith.constant 0 : index
    %c0_2 = arith.constant 0 : index
    %c0_3 = arith.constant 0 : index
    %1 = vector.load %arg2[%c0_1, %c0_2, %c0_3] : memref<10x128x128xbf16, #tpu.memory_space<vmem>>, vector<1x16x128xbf16>
    %2 = vector.shape_cast %1 : vector<1x16x128xbf16> to vector<16x128xbf16>
    %c0_4 = arith.constant 0 : index
    %c0_5 = arith.constant 0 : index
    %3 = vector.load %arg3[%c0_4, %c0_5] : memref<16x128xf32, #tpu.memory_space<vmem>>, vector<1x128xf32>
    %4 = arith.truncf %0 : vector<8x16xf32> to vector<8x16xbf16>
    %cst = arith.constant dense<0.000000e+00> : vector<8x128xf32>
    %5 = tpu.matmul %4, %2, %cst {dimension_numbers = #tpu.dot_dimension_numbers<[1], [0], [0], [1], [0, 0, 1, 1], [], []>} : vector<8x16xbf16>, vector<16x128xbf16>, vector<8x128xf32> -> vector<8x128xf32>
    %6 = vector.broadcast %3 : vector<1x128xf32> to vector<8x128xf32>
    %7 = arith.addf %5, %6 : vector<8x128xf32>
    %cst_6 = arith.constant 0.000000e+00 : f32
    %8 = vector.broadcast %cst_6 : f32 to vector<8x128xf32>
    %9 = arith.maximumf %7, %8 : vector<8x128xf32>
    %c1 = arith.constant 1 : index
    %c0_7 = arith.constant 0 : index
    %c0_8 = arith.constant 0 : index
    %10 = vector.load %arg2[%c1, %c0_7, %c0_8] : memref<10x128x128xbf16, #tpu.memory_space<vmem>>, vector<1x128x128xbf16>
    %11 = vector.shape_cast %10 : vector<1x128x128xbf16> to vector<128x128xbf16>
    %c1_9 = arith.constant 1 : index
    %c0_10 = arith.constant 0 : index
    %12 = vector.load %arg3[%c1_9, %c0_10] : memref<16x128xf32, #tpu.memory_space<vmem>>, vector<1x128xf32>
    %13 = arith.truncf %9 : vector<8x128xf32> to vector<8x128xbf16>
    %cst_11 = arith.constant dense<0.000000e+00> : vector<8x128xf32>
    %14 = tpu.matmul %13, %11, %cst_11 {dimension_numbers = #tpu.dot_dimension_numbers<[1], [0], [0], [1], [0, 0, 1, 1], [], []>} : vector<8x128xbf16>, vector<128x128xbf16>, vector<8x128xf32> -> vector<8x128xf32>
    %15 = vector.broadcast %12 : vector<1x128xf32> to vector<8x128xf32>
    %16 = arith.addf %14, %15 : vector<8x128xf32>
    %cst_12 = arith.constant 0.000000e+00 : f32
    %17 = vector.broadcast %cst_12 : f32 to vector<8x128xf32>
    %18 = arith.maximumf %16, %17 : vector<8x128xf32>
    %c2 = arith.constant 2 : index
    %c0_13 = arith.constant 0 : index
    %c0_14 = arith.constant 0 : index
    %19 = vector.load %arg2[%c2, %c0_13, %c0_14] : memref<10x128x128xbf16, #tpu.memory_space<vmem>>, vector<1x128x128xbf16>
    %20 = vector.shape_cast %19 : vector<1x128x128xbf16> to vector<128x128xbf16>
    %c2_15 = arith.constant 2 : index
    %c0_16 = arith.constant 0 : index
    %21 = vector.load %arg3[%c2_15, %c0_16] : memref<16x128xf32, #tpu.memory_space<vmem>>, vector<1x128xf32>
    %22 = arith.truncf %18 : vector<8x128xf32> to vector<8x128xbf16>
    %cst_17 = arith.constant dense<0.000000e+00> : vector<8x128xf32>
    %23 = tpu.matmul %22, %20, %cst_17 {dimension_numbers = #tpu.dot_dimension_numbers<[1], [0], [0], [1], [0, 0, 1, 1], [], []>} : vector<8x128xbf16>, vector<128x128xbf16>, vector<8x128xf32> -> vector<8x128xf32>
    %24 = vector.broadcast %21 : vector<1x128xf32> to vector<8x128xf32>
    %25 = arith.addf %23, %24 : vector<8x128xf32>
    %cst_18 = arith.constant 0.000000e+00 : f32
    %26 = vector.broadcast %cst_18 : f32 to vector<8x128xf32>
    %27 = arith.maximumf %25, %26 : vector<8x128xf32>
    %c3 = arith.constant 3 : index
    %c0_19 = arith.constant 0 : index
    %c0_20 = arith.constant 0 : index
    %28 = vector.load %arg2[%c3, %c0_19, %c0_20] : memref<10x128x128xbf16, #tpu.memory_space<vmem>>, vector<1x128x128xbf16>
    %29 = vector.shape_cast %28 : vector<1x128x128xbf16> to vector<128x128xbf16>
    %c3_21 = arith.constant 3 : index
    %c0_22 = arith.constant 0 : index
    %30 = vector.load %arg3[%c3_21, %c0_22] : memref<16x128xf32, #tpu.memory_space<vmem>>, vector<1x128xf32>
    %31 = arith.truncf %27 : vector<8x128xf32> to vector<8x128xbf16>
    %cst_23 = arith.constant dense<0.000000e+00> : vector<8x128xf32>
    %32 = tpu.matmul %31, %29, %cst_23 {dimension_numbers = #tpu.dot_dimension_numbers<[1], [0], [0], [1], [0, 0, 1, 1], [], []>} : vector<8x128xbf16>, vector<128x128xbf16>, vector<8x128xf32> -> vector<8x128xf32>
    %33 = vector.broadcast %30 : vector<1x128xf32> to vector<8x128xf32>
    %34 = arith.addf %32, %33 : vector<8x128xf32>
    %cst_24 = arith.constant 0.000000e+00 : f32
    %35 = vector.broadcast %cst_24 : f32 to vector<8x128xf32>
    %36 = arith.maximumf %34, %35 : vector<8x128xf32>
    %c4 = arith.constant 4 : index
    %c0_25 = arith.constant 0 : index
    %c0_26 = arith.constant 0 : index
    %37 = vector.load %arg2[%c4, %c0_25, %c0_26] : memref<10x128x128xbf16, #tpu.memory_space<vmem>>, vector<1x128x128xbf16>
    %38 = vector.shape_cast %37 : vector<1x128x128xbf16> to vector<128x128xbf16>
    %c4_27 = arith.constant 4 : index
    %c0_28 = arith.constant 0 : index
    %39 = vector.load %arg3[%c4_27, %c0_28] : memref<16x128xf32, #tpu.memory_space<vmem>>, vector<1x128xf32>
    %40 = arith.truncf %36 : vector<8x128xf32> to vector<8x128xbf16>
    %cst_29 = arith.constant dense<0.000000e+00> : vector<8x128xf32>
    %41 = tpu.matmul %40, %38, %cst_29 {dimension_numbers = #tpu.dot_dimension_numbers<[1], [0], [0], [1], [0, 0, 1, 1], [], []>} : vector<8x128xbf16>, vector<128x128xbf16>, vector<8x128xf32> -> vector<8x128xf32>
    %42 = vector.broadcast %39 : vector<1x128xf32> to vector<8x128xf32>
    %43 = arith.addf %41, %42 : vector<8x128xf32>
    %44 = vector.extract_strided_slice %43 {offsets = [0, 0], sizes = [8, 8], strides = [1, 1]} : vector<8x128xf32> to vector<8x8xf32>
    %c0_30 = arith.constant 0 : index
    %c0_31 = arith.constant 0 : index
    %45 = vector.load %arg5[%c0_30, %c0_31] : memref<8x8xf32, #tpu.memory_space<vmem>>, vector<8x8xf32>
    tpu.vector_store %arg5[%c0_30, %c0_31], %44 {strides = array<i32>} : memref<8x8xf32, #tpu.memory_space<vmem>>, vector<8x8xf32>,
    %c5 = arith.constant 5 : index
    %c0_32 = arith.constant 0 : index
    %c0_33 = arith.constant 0 : index
    %46 = vector.load %arg2[%c5, %c0_32, %c0_33] : memref<10x128x128xbf16, #tpu.memory_space<vmem>>, vector<1x128x128xbf16>
    %47 = vector.shape_cast %46 : vector<1x128x128xbf16> to vector<128x128xbf16>
    %c5_34 = arith.constant 5 : index
    %c0_35 = arith.constant 0 : index
    %48 = vector.load %arg3[%c5_34, %c0_35] : memref<16x128xf32, #tpu.memory_space<vmem>>, vector<1x128xf32>
    %49 = arith.truncf %43 : vector<8x128xf32> to vector<8x128xbf16>
    %cst_36 = arith.constant dense<0.000000e+00> : vector<8x128xf32>
    %50 = tpu.matmul %49, %47, %cst_36 {dimension_numbers = #tpu.dot_dimension_numbers<[1], [0], [0], [1], [0, 0, 1, 1], [], []>} : vector<8x128xbf16>, vector<128x128xbf16>, vector<8x128xf32> -> vector<8x128xf32>
    %51 = vector.broadcast %48 : vector<1x128xf32> to vector<8x128xf32>
    %52 = arith.addf %50, %51 : vector<8x128xf32>
    %cst_37 = arith.constant 0.000000e+00 : f32
    %53 = vector.broadcast %cst_37 : f32 to vector<8x128xf32>
    %54 = arith.maximumf %52, %53 : vector<8x128xf32>
    %c6 = arith.constant 6 : index
    %c0_38 = arith.constant 0 : index
    %c0_39 = arith.constant 0 : index
    %55 = vector.load %arg2[%c6, %c0_38, %c0_39] : memref<10x128x128xbf16, #tpu.memory_space<vmem>>, vector<1x128x128xbf16>
    %56 = vector.shape_cast %55 : vector<1x128x128xbf16> to vector<128x128xbf16>
    %c6_40 = arith.constant 6 : index
    %c0_41 = arith.constant 0 : index
    %57 = vector.load %arg3[%c6_40, %c0_41] : memref<16x128xf32, #tpu.memory_space<vmem>>, vector<1x128xf32>
    %58 = arith.truncf %54 : vector<8x128xf32> to vector<8x128xbf16>
    %cst_42 = arith.constant dense<0.000000e+00> : vector<8x128xf32>
    %59 = tpu.matmul %58, %56, %cst_42 {dimension_numbers = #tpu.dot_dimension_numbers<[1], [0], [0], [1], [0, 0, 1, 1], [], []>} : vector<8x128xbf16>, vector<128x128xbf16>, vector<8x128xf32> -> vector<8x128xf32>
    %60 = vector.broadcast %57 : vector<1x128xf32> to vector<8x128xf32>
    %61 = arith.addf %59, %60 : vector<8x128xf32>
    %cst_43 = arith.constant 0.000000e+00 : f32
    %62 = vector.broadcast %cst_43 : f32 to vector<8x128xf32>
    %63 = arith.maximumf %61, %62 : vector<8x128xf32>
    %c7 = arith.constant 7 : index
    %c0_44 = arith.constant 0 : index
    %c0_45 = arith.constant 0 : index
    %64 = vector.load %arg2[%c7, %c0_44, %c0_45] : memref<10x128x128xbf16, #tpu.memory_space<vmem>>, vector<1x128x128xbf16>
    %65 = vector.shape_cast %64 : vector<1x128x128xbf16> to vector<128x128xbf16>
    %c7_46 = arith.constant 7 : index
    %c0_47 = arith.constant 0 : index
    %66 = vector.load %arg3[%c7_46, %c0_47] : memref<16x128xf32, #tpu.memory_space<vmem>>, vector<1x128xf32>
    %67 = arith.truncf %63 : vector<8x128xf32> to vector<8x128xbf16>
    %cst_48 = arith.constant dense<0.000000e+00> : vector<8x128xf32>
    %68 = tpu.matmul %67, %65, %cst_48 {dimension_numbers = #tpu.dot_dimension_numbers<[1], [0], [0], [1], [0, 0, 1, 1], [], []>} : vector<8x128xbf16>, vector<128x128xbf16>, vector<8x128xf32> -> vector<8x128xf32>
    %69 = vector.broadcast %66 : vector<1x128xf32> to vector<8x128xf32>
    %70 = arith.addf %68, %69 : vector<8x128xf32>
    %cst_49 = arith.constant 0.000000e+00 : f32
    %71 = vector.broadcast %cst_49 : f32 to vector<8x128xf32>
    %72 = arith.maximumf %70, %71 : vector<8x128xf32>
    %c8 = arith.constant 8 : index
    %c0_50 = arith.constant 0 : index
    %c0_51 = arith.constant 0 : index
    %73 = vector.load %arg2[%c8, %c0_50, %c0_51] : memref<10x128x128xbf16, #tpu.memory_space<vmem>>, vector<1x128x128xbf16>
    %74 = vector.shape_cast %73 : vector<1x128x128xbf16> to vector<128x128xbf16>
    %c8_52 = arith.constant 8 : index
    %c0_53 = arith.constant 0 : index
    %75 = vector.load %arg3[%c8_52, %c0_53] : memref<16x128xf32, #tpu.memory_space<vmem>>, vector<1x128xf32>
    %76 = arith.truncf %72 : vector<8x128xf32> to vector<8x128xbf16>
    %cst_54 = arith.constant dense<0.000000e+00> : vector<8x128xf32>
    %77 = tpu.matmul %76, %74, %cst_54 {dimension_numbers = #tpu.dot_dimension_numbers<[1], [0], [0], [1], [0, 0, 1, 1], [], []>} : vector<8x128xbf16>, vector<128x128xbf16>, vector<8x128xf32> -> vector<8x128xf32>
    %78 = vector.broadcast %75 : vector<1x128xf32> to vector<8x128xf32>
    %79 = arith.addf %77, %78 : vector<8x128xf32>
    %cst_55 = arith.constant 0.000000e+00 : f32
    %80 = vector.broadcast %cst_55 : f32 to vector<8x128xf32>
    %81 = arith.maximumf %79, %80 : vector<8x128xf32>
    %c9 = arith.constant 9 : index
    %c0_56 = arith.constant 0 : index
    %c0_57 = arith.constant 0 : index
    %82 = vector.load %arg2[%c9, %c0_56, %c0_57] : memref<10x128x128xbf16, #tpu.memory_space<vmem>>, vector<1x128x128xbf16>
    %83 = vector.shape_cast %82 : vector<1x128x128xbf16> to vector<128x128xbf16>
    %c9_58 = arith.constant 9 : index
    %c0_59 = arith.constant 0 : index
    %84 = vector.load %arg3[%c9_58, %c0_59] : memref<16x128xf32, #tpu.memory_space<vmem>>, vector<1x128xf32>
    %85 = arith.truncf %81 : vector<8x128xf32> to vector<8x128xbf16>
    %cst_60 = arith.constant dense<0.000000e+00> : vector<8x128xf32>
    %86 = tpu.matmul %85, %83, %cst_60 {dimension_numbers = #tpu.dot_dimension_numbers<[1], [0], [0], [1], [0, 0, 1, 1], [], []>} : vector<8x128xbf16>, vector<128x128xbf16>, vector<8x128xf32> -> vector<8x128xf32>
    %87 = vector.broadcast %84 : vector<1x128xf32> to vector<8x128xf32>
    %88 = arith.addf %86, %87 : vector<8x128xf32>
    %89 = vector.extract_strided_slice %88 {offsets = [0, 0], sizes = [8, 16], strides = [1, 1]} : vector<8x128xf32> to vector<8x16xf32>
    %c0_61 = arith.constant 0 : index
    %c0_62 = arith.constant 0 : index
    %90 = vector.load %arg4[%c0_61, %c0_62] : memref<8x16xf32, #tpu.memory_space<vmem>>, vector<8x16xf32>
    tpu.vector_store %arg4[%c0_61, %c0_62], %89 {strides = array<i32>} : memref<8x16xf32, #tpu.memory_space<vmem>>, vector<8x16xf32>,
    return
  }
  func.func @transform_0(%arg0: i32) -> (i32, i32) {
    %c0_i32 = arith.constant 0 : i32
    %c0_i32_0 = arith.constant 0 : i32
    return %arg0, %c0_i32 : i32, i32
  }
  func.func @transform_1(%arg0: i32) -> (i32, i32, i32) {
    %c0_i32 = arith.constant 0 : i32
    %c0_i32_0 = arith.constant 0 : i32
    %c0_i32_1 = arith.constant 0 : i32
    %c0_i32_2 = arith.constant 0 : i32
    return %c0_i32, %c0_i32_0, %c0_i32_1 : i32, i32, i32
  }
  func.func @transform_2(%arg0: i32) -> (i32, i32) {
    %c0_i32 = arith.constant 0 : i32
    %c0_i32_0 = arith.constant 0 : i32
    %c0_i32_1 = arith.constant 0 : i32
    return %c0_i32, %c0_i32_0 : i32, i32
  }
  func.func @transform_3(%arg0: i32) -> (i32, i32) {
    %c0_i32 = arith.constant 0 : i32
    %c0_i32_0 = arith.constant 0 : i32
    return %arg0, %c0_i32 : i32, i32
  }
  func.func @transform_4(%arg0: i32) -> (i32, i32) {
    %c0_i32 = arith.constant 0 : i32
    %c0_i32_0 = arith.constant 0 : i32
    return %arg0, %c0_i32 : i32, i32
  }
}

</mosaic_0001>

<llo_original>
// kernel: _fwd.1
$region0: #{_fwd.1}
  #allocation0 [shape = 'u32[]', space=smem, size = 0x4, offset = 0x4, fixed_abs, tag = 'smem constant byte address 0x4 - core index']
  #allocation1 [shape = 'u32[144,128]{1,0:T(1,128)}', space=vmem, size = 0x12000, scoped, tag = 'internal scratch']
  %s0 = inlined_call_operand.hbm [shape: f32[8,16], index: 0, kind: input, shape index: {}]
  %s1 = inlined_call_operand.hbm [shape: bf16[10,128,128], index: 1, kind: input, shape index: {}]
  %s2 = inlined_call_operand.hbm [shape: f32[16,128], index: 2, kind: input, shape index: {}]
  %s3 = inlined_call_operand.hbm [shape: f32[8,16], index: 3, kind: output, shape index: {0}]
  %s4 = inlined_call_operand.vmem [shape: f32[8,8], index: 4, kind: output, shape index: {1}]
  %5 = xla_tuple %s3, %s4
  %s6 = sld [smem:[#allocation0]]
  $region42: #{_fwd.1} parent=0
    _
  %s8 = ssub.s32 1, %s6
  %s9 = scalar_select 0, %s8, %s6
  $region1: #{_fwd.1} parent=0
    #allocation2 [shape = 'u8[4096]{0}', space=vmem, size = 0x1000, scoped, tag = 'input window, operand 0, single buffered']
    #allocation3 [shape = 's32[1]{0}', space=sflag, size = 0x4, scoped, tag = 'scoped memory for _fwd.1']
    #allocation4 [shape = 's32[1]{0}', space=sflag, size = 0x4, scoped, tag = 'scoped memory for _fwd.1']
    #allocation5 [shape = 'u8[327680]{0}', space=vmem, size = 0x50000, scoped, tag = 'input window, operand 1, single buffered']
    #allocation6 [shape = 's32[1]{0}', space=sflag, size = 0x4, scoped, tag = 'scoped memory for _fwd.1']
    #allocation7 [shape = 'u8[8192]{0}', space=vmem, size = 0x2000, scoped, tag = 'input window, operand 2, single buffered']
    #allocation8 [shape = 'u8[4096]{0}', space=vmem, size = 0x1000, scoped, tag = 'output window, operand 0, single buffered']
    %10 = vsyncpa [#allocation3], 0
    %11 = vsyncpa [#allocation6], 0
    %12 = vsyncpa [#allocation4], 0
    // Predicated region
    $region2: #{_fwd.1} parent=1 // pred_check
      _
    $region3: #{_fwd.1} parent=1 // pred_check_branch
      %14 = sbr.rel (0) target = $region5
    $region4: #{_fwd.1} parent=1 // pred_region
      %s16 = ssub.s32 128, 128
      %17 = vsyncadd [#allocation3], %s16
      %s19 = sshll.u32 [#allocation2], 4
      %s20 = int_to_ptr.vmem [resolvable:$true] %s19
      %22 = dma.hbm_to_vmem [thread:$0]  %s0, 128, %s20, [#allocation3]
    $region5: #{_fwd.1} parent=1 // pred_fallthru
      _
    // Predicated region
    $region6: #{_fwd.1} parent=1 // pred_check
      _
    $region7: #{_fwd.1} parent=1 // pred_check_branch
      %24 = sbr.rel (0) target = $region9
    $region8: #{_fwd.1} parent=1 // pred_region
      %s26 = ssub.s32 10240, 10240
      %27 = vsyncadd [#allocation6], %s26
      %s28 = sshll.u32 [#allocation5], 4
      %s29 = int_to_ptr.vmem [resolvable:$true] %s28
      %34 = dma.hbm_to_vmem [thread:$0]  %s1, 10240, %s29, [#allocation6], 64, 64, 4
    $region9: #{_fwd.1} parent=1 // pred_fallthru
      _
    // Predicated region
    $region10: #{_fwd.1} parent=1 // pred_check
      _
    $region11: #{_fwd.1} parent=1 // pred_check_branch
      %36 = sbr.rel (0) target = $region13
    $region12: #{_fwd.1} parent=1 // pred_region
      %s38 = ssub.s32 256, 256
      %39 = vsyncadd [#allocation6], %s38
      %s40 = sshll.u32 [#allocation7], 4
      %s41 = int_to_ptr.vmem [resolvable:$true] %s40
      %46 = dma.hbm_to_vmem [thread:$0]  %s2, 256, %s41, [#allocation6], 128, 128, 8
    $region13: #{_fwd.1} parent=1 // pred_fallthru
      _
    // Predicated region
    $region14: #{_fwd.1} parent=1 // pred_check
      _
    $region15: #{_fwd.1} parent=1 // pred_check_branch
      %48 = sbr.rel (0) target = $region17
    $region16: #{_fwd.1} parent=1 // pred_region
      %49 = dma.done [#allocation3], 128
    $region17: #{_fwd.1} parent=1 // pred_fallthru
      _
    // Predicated region
    $region18: #{_fwd.1} parent=1 // pred_check
      _
    $region19: #{_fwd.1} parent=1 // pred_check_branch
      %51 = sbr.rel (0) target = $region21
    $region20: #{_fwd.1} parent=1 // pred_region
      %52 = dma.done [#allocation6], 10240
    $region21: #{_fwd.1} parent=1 // pred_fallthru
      _
    // Predicated region
    $region22: #{_fwd.1} parent=1 // pred_check
      _
    $region23: #{_fwd.1} parent=1 // pred_check_branch
      %54 = sbr.rel (0) target = $region25
    $region24: #{_fwd.1} parent=1 // pred_region
      %55 = dma.done [#allocation6], 256
    $region25: #{_fwd.1} parent=1 // pred_fallthru
      _
    %v57 = vld [vmem:[#allocation2] sm:$0xff]
    %v58 = vld [vmem:[#allocation5] sm:$0xf]
    %v59 = vld [vmem:[#allocation5 + $0x4] sm:$0xf]
    %v60 = vld [vmem:[#allocation7] sm:$0x1]
    %v61 = vpack.c.bf16 %v57, %v57
    %v62 = vlaneseq
    %v63 = vshrl.u32 %v62, 7
    %v64 = vsub.s32 0, %v63
    %v65 = vrot.slane %v60, %v64
    %v68 = vunpack.c.l.b16 %v58
    %v69 = vunpack.c.l.b16 %v59
    %v70 = vpack.c.b16 %v69, %v68
    %vm72 = vcmask 130048
    %v74 = vsel %vm72, %v61, 0
    %76 = vmatprep.subr.bf16.mxu0 0
    %77 = vmatpush1.bf16.msra.mxu0 %v70
    %78 = vmatprep.subr.bf16.mxu0 0
    %79 = vmatpush1.bf16.msra.mxu0 0
    %80 = vmatprep.subr.bf16.mxu0 0
    %81 = vmatpush1.bf16.msra.mxu0 0
    %82 = vmatprep.subr.bf16.mxu0 0
    %83 = vmatpush1.bf16.msra.mxu0 0
    %84 = vmatprep.subr.bf16.mxu0 0
    %85 = vmatpush1.bf16.msra.mxu0 0
    %86 = vmatprep.subr.bf16.mxu0 0
    %87 = vmatpush1.bf16.msra.mxu0 0
    %88 = vmatprep.subr.bf16.mxu0 0
    %89 = vmatpush1.bf16.msra.mxu0 0
    %90 = vmatprep.subr.bf16.mxu0 0
    %91 = vmatpush1.bf16.msra.mxu0 0
    %92 = vmatprep.subr.bf16.mxu0 0
    %93 = vmatpush1.bf16.msra.mxu0 0
    %94 = vmatprep.subr.bf16.mxu0 0
    %95 = vmatpush1.bf16.msra.mxu0 0
    %96 = vmatprep.subr.bf16.mxu0 0
    %97 = vmatpush1.bf16.msra.mxu0 0
    %98 = vmatprep.subr.bf16.mxu0 0
    %99 = vmatpush1.bf16.msra.mxu0 0
    %100 = vmatprep.subr.bf16.mxu0 0
    %101 = vmatpush1.bf16.msra.mxu0 0
    %102 = vmatprep.subr.bf16.mxu0 0
    %103 = vmatpush1.bf16.msra.mxu0 0
    %104 = vmatprep.subr.bf16.mxu0 0
    %105 = vmatpush1.bf16.msra.mxu0 0
    %106 = vmatprep.subr.bf16.mxu0 0
    %107 = vmatpush1.bf16.msra.mxu0 0
    %108 = vmatprep.mubr.bf16.mxu0 0
    %109 = vmatmul.mubr.bf16.gmra.mrb[0].mxu0 %v74
    %v110 = vpop.f32.mrb[0].mxu0
    %v111 = vadd.f32 %v65, %v110
    %v112 = vpop.f32.mrb[0].mxu0
    %v113 = vpop.f32.mrb[0].mxu0
    %v114 = vpop.f32.mrb[0].mxu0
    %115 = vdwg.mxu0
    %v116 = vmax.f32 %v111, 0.0
    %s117 = scalar_lea.vmem [#allocation5], 64
    %v118 = vld [vmem:[%s117] sm:$0xf]
    %v119 = vld [vmem:[%s117 + $0x4] sm:$0xf]
    %v120 = vld [vmem:[%s117 + $0x8] sm:$0xf]
    %v121 = vld [vmem:[%s117 + $0xc] sm:$0xf]
    %v122 = vld [vmem:[%s117 + $0x10] sm:$0xf]
    %v123 = vld [vmem:[%s117 + $0x14] sm:$0xf]
    %v124 = vld [vmem:[%s117 + $0x18] sm:$0xf]
    %v125 = vld [vmem:[%s117 + $0x1c] sm:$0xf]
    %v126 = vld [vmem:[%s117 + $0x20] sm:$0xf]
    %v127 = vld [vmem:[%s117 + $0x24] sm:$0xf]
    %v128 = vld [vmem:[%s117 + $0x28] sm:$0xf]
    %v129 = vld [vmem:[%s117 + $0x2c] sm:$0xf]
    %v130 = vld [vmem:[%s117 + $0x30] sm:$0xf]
    %v131 = vld [vmem:[%s117 + $0x34] sm:$0xf]
    %v132 = vld [vmem:[%s117 + $0x38] sm:$0xf]
    %v133 = vld [vmem:[%s117 + $0x3c] sm:$0xf]
    %v134 = vld [vmem:[#allocation7 + $0x1] sm:$0x1]
    %v135 = vpack.c.bf16 %v116, %v116
    %v136 = vlaneseq
    %v137 = vshrl.u32 %v136, 7
    %v138 = vsub.s32 0, %v137
    %v139 = vrot.slane %v134, %v138
    %v156 = vunpack.c.l.b16 %v118
    %v157 = vunpack.c.l.b16 %v119
    %v158 = vunpack.c.l.b16 %v120
    %v159 = vunpack.c.l.b16 %v121
    %v160 = vunpack.c.l.b16 %v122
    %v161 = vunpack.c.l.b16 %v123
    %v162 = vunpack.c.l.b16 %v124
    %v163 = vunpack.c.l.b16 %v125
    %v164 = vunpack.c.l.b16 %v126
    %v165 = vunpack.c.l.b16 %v127
    %v166 = vunpack.c.l.b16 %v128
    %v167 = vunpack.c.l.b16 %v129
    %v168 = vunpack.c.l.b16 %v130
    %v169 = vunpack.c.l.b16 %v131
    %v170 = vunpack.c.l.b16 %v132
    %v171 = vunpack.c.l.b16 %v133
    %v172 = vpack.c.b16 %v157, %v156
    %v173 = vpack.c.b16 %v159, %v158
    %v174 = vpack.c.b16 %v161, %v160
    %v175 = vpack.c.b16 %v163, %v162
    %v176 = vpack.c.b16 %v165, %v164
    %v177 = vpack.c.b16 %v167, %v166
    %v178 = vpack.c.b16 %v169, %v168
    %v179 = vpack.c.b16 %v171, %v170
    %188 = vmatprep.subr.bf16.mxu0 0
    %189 = vmatpush1.bf16.msra.mxu0 %v172
    %190 = vmatprep.subr.bf16.mxu0 0
    %191 = vmatpush1.bf16.msra.mxu0 %v173
    %192 = vmatprep.subr.bf16.mxu0 0
    %193 = vmatpush1.bf16.msra.mxu0 %v174
    %194 = vmatprep.subr.bf16.mxu0 0
    %195 = vmatpush1.bf16.msra.mxu0 %v175
    %196 = vmatprep.subr.bf16.mxu0 0
    %197 = vmatpush1.bf16.msra.mxu0 %v176
    %198 = vmatprep.subr.bf16.mxu0 0
    %199 = vmatpush1.bf16.msra.mxu0 %v177
    %200 = vmatprep.subr.bf16.mxu0 0
    %201 = vmatpush1.bf16.msra.mxu0 %v178
    %202 = vmatprep.subr.bf16.mxu0 0
    %203 = vmatpush1.bf16.msra.mxu0 %v179
    %204 = vmatprep.subr.bf16.mxu0 0
    %205 = vmatpush1.bf16.msra.mxu0 0
    %206 = vmatprep.subr.bf16.mxu0 0
    %207 = vmatpush1.bf16.msra.mxu0 0
    %208 = vmatprep.subr.bf16.mxu0 0
    %209 = vmatpush1.bf16.msra.mxu0 0
    %210 = vmatprep.subr.bf16.mxu0 0
    %211 = vmatpush1.bf16.msra.mxu0 0
    %212 = vmatprep.subr.bf16.mxu0 0
    %213 = vmatpush1.bf16.msra.mxu0 0
    %214 = vmatprep.subr.bf16.mxu0 0
    %215 = vmatpush1.bf16.msra.mxu0 0
    %216 = vmatprep.subr.bf16.mxu0 0
    %217 = vmatpush1.bf16.msra.mxu0 0
    %218 = vmatprep.subr.bf16.mxu0 0
    %219 = vmatpush1.bf16.msra.mxu0 0
    %220 = vmatprep.mubr.bf16.mxu0 0
    %221 = vmatmul.mubr.bf16.gmra.mrb[0].mxu0 %v135
    %v222 = vpop.f32.mrb[0].mxu0
    %v223 = vadd.f32 %v139, %v222
    %v224 = vpop.f32.mrb[0].mxu0
    %v225 = vpop.f32.mrb[0].mxu0
    %v226 = vpop.f32.mrb[0].mxu0
    %227 = vdwg.mxu0
    %v228 = vmax.f32 %v223, 0.0
    %s229 = scalar_lea.vmem [#allocation5], 128
    %v230 = vld [vmem:[%s229] sm:$0xf]
    %v231 = vld [vmem:[%s229 + $0x4] sm:$0xf]
    %v232 = vld [vmem:[%s229 + $0x8] sm:$0xf]
    %v233 = vld [vmem:[%s229 + $0xc] sm:$0xf]
    %v234 = vld [vmem:[%s229 + $0x10] sm:$0xf]
    %v235 = vld [vmem:[%s229 + $0x14] sm:$0xf]
    %v236 = vld [vmem:[%s229 + $0x18] sm:$0xf]
    %v237 = vld [vmem:[%s229 + $0x1c] sm:$0xf]
    %v238 = vld [vmem:[%s229 + $0x20] sm:$0xf]
    %v239 = vld [vmem:[%s229 + $0x24] sm:$0xf]
    %v240 = vld [vmem:[%s229 + $0x28] sm:$0xf]
    %v241 = vld [vmem:[%s229 + $0x2c] sm:$0xf]
    %v242 = vld [vmem:[%s229 + $0x30] sm:$0xf]
    %v243 = vld [vmem:[%s229 + $0x34] sm:$0xf]
    %v244 = vld [vmem:[%s229 + $0x38] sm:$0xf]
    %v245 = vld [vmem:[%s229 + $0x3c] sm:$0xf]
    %v246 = vld [vmem:[#allocation7 + $0x2] sm:$0x1]
    %v247 = vpack.c.bf16 %v228, %v228
    %v248 = vlaneseq
    %v249 = vshrl.u32 %v248, 7
    %v250 = vsub.s32 0, %v249
    %v251 = vrot.slane %v246, %v250
    %v268 = vunpack.c.l.b16 %v230
    %v269 = vunpack.c.l.b16 %v231
    %v270 = vunpack.c.l.b16 %v232
    %v271 = vunpack.c.l.b16 %v233
    %v272 = vunpack.c.l.b16 %v234
    %v273 = vunpack.c.l.b16 %v235
    %v274 = vunpack.c.l.b16 %v236
    %v275 = vunpack.c.l.b16 %v237
    %v276 = vunpack.c.l.b16 %v238
    %v277 = vunpack.c.l.b16 %v239
    %v278 = vunpack.c.l.b16 %v240
    %v279 = vunpack.c.l.b16 %v241
    %v280 = vunpack.c.l.b16 %v242
    %v281 = vunpack.c.l.b16 %v243
    %v282 = vunpack.c.l.b16 %v244
    %v283 = vunpack.c.l.b16 %v245
    %v284 = vpack.c.b16 %v269, %v268
    %v285 = vpack.c.b16 %v271, %v270
    %v286 = vpack.c.b16 %v273, %v272
    %v287 = vpack.c.b16 %v275, %v274
    %v288 = vpack.c.b16 %v277, %v276
    %v289 = vpack.c.b16 %v279, %v278
    %v290 = vpack.c.b16 %v281, %v280
    %v291 = vpack.c.b16 %v283, %v282
    %300 = vmatprep.subr.bf16.mxu0 0
    %301 = vmatpush1.bf16.msra.mxu0 %v284
    %302 = vmatprep.subr.bf16.mxu0 0
    %303 = vmatpush1.bf16.msra.mxu0 %v285
    %304 = vmatprep.subr.bf16.mxu0 0
    %305 = vmatpush1.bf16.msra.mxu0 %v286
    %306 = vmatprep.subr.bf16.mxu0 0
    %307 = vmatpush1.bf16.msra.mxu0 %v287
    %308 = vmatprep.subr.bf16.mxu0 0
    %309 = vmatpush1.bf16.msra.mxu0 %v288
    %310 = vmatprep.subr.bf16.mxu0 0
    %311 = vmatpush1.bf16.msra.mxu0 %v289
    %312 = vmatprep.subr.bf16.mxu0 0
    %313 = vmatpush1.bf16.msra.mxu0 %v290
    %314 = vmatprep.subr.bf16.mxu0 0
    %315 = vmatpush1.bf16.msra.mxu0 %v291
    %316 = vmatprep.subr.bf16.mxu0 0
    %317 = vmatpush1.bf16.msra.mxu0 0
    %318 = vmatprep.subr.bf16.mxu0 0
    %319 = vmatpush1.bf16.msra.mxu0 0
    %320 = vmatprep.subr.bf16.mxu0 0
    %321 = vmatpush1.bf16.msra.mxu0 0
    %322 = vmatprep.subr.bf16.mxu0 0
    %323 = vmatpush1.bf16.msra.mxu0 0
    %324 = vmatprep.subr.bf16.mxu0 0
    %325 = vmatpush1.bf16.msra.mxu0 0
    %326 = vmatprep.subr.bf16.mxu0 0
    %327 = vmatpush1.bf16.msra.mxu0 0
    %328 = vmatprep.subr.bf16.mxu0 0
    %329 = vmatpush1.bf16.msra.mxu0 0
    %330 = vmatprep.subr.bf16.mxu0 0
    %331 = vmatpush1.bf16.msra.mxu0 0
    %332 = vmatprep.mubr.bf16.mxu0 0
    %333 = vmatmul.mubr.bf16.gmra.mrb[0].mxu0 %v247
    %v334 = vpop.f32.mrb[0].mxu0
    %v335 = vadd.f32 %v251, %v334
    %v336 = vpop.f32.mrb[0].mxu0
    %v337 = vpop.f32.mrb[0].mxu0
    %v338 = vpop.f32.mrb[0].mxu0
    %339 = vdwg.mxu0
    %v340 = vmax.f32 %v335, 0.0
    %s341 = scalar_lea.vmem [#allocation5], 192
    %v342 = vld [vmem:[%s341] sm:$0xf]
    %v343 = vld [vmem:[%s341 + $0x4] sm:$0xf]
    %v344 = vld [vmem:[%s341 + $0x8] sm:$0xf]
    %v345 = vld [vmem:[%s341 + $0xc] sm:$0xf]
    %v346 = vld [vmem:[%s341 + $0x10] sm:$0xf]
    %v347 = vld [vmem:[%s341 + $0x14] sm:$0xf]
    %v348 = vld [vmem:[%s341 + $0x18] sm:$0xf]
    %v349 = vld [vmem:[%s341 + $0x1c] sm:$0xf]
    %v350 = vld [vmem:[%s341 + $0x20] sm:$0xf]
    %v351 = vld [vmem:[%s341 + $0x24] sm:$0xf]
    %v352 = vld [vmem:[%s341 + $0x28] sm:$0xf]
    %v353 = vld [vmem:[%s341 + $0x2c] sm:$0xf]
    %v354 = vld [vmem:[%s341 + $0x30] sm:$0xf]
    %v355 = vld [vmem:[%s341 + $0x34] sm:$0xf]
    %v356 = vld [vmem:[%s341 + $0x38] sm:$0xf]
    %v357 = vld [vmem:[%s341 + $0x3c] sm:$0xf]
    %v358 = vld [vmem:[#allocation7 + $0x3] sm:$0x1]
    %v359 = vpack.c.bf16 %v340, %v340
    %v360 = vlaneseq
    %v361 = vshrl.u32 %v360, 7
    %v362 = vsub.s32 0, %v361
    %v363 = vrot.slane %v358, %v362
    %v380 = vunpack.c.l.b16 %v342
    %v381 = vunpack.c.l.b16 %v343
    %v382 = vunpack.c.l.b16 %v344
    %v383 = vunpack.c.l.b16 %v345
    %v384 = vunpack.c.l.b16 %v346
    %v385 = vunpack.c.l.b16 %v347
    %v386 = vunpack.c.l.b16 %v348
    %v387 = vunpack.c.l.b16 %v349
    %v388 = vunpack.c.l.b16 %v350
    %v389 = vunpack.c.l.b16 %v351
    %v390 = vunpack.c.l.b16 %v352
    %v391 = vunpack.c.l.b16 %v353
    %v392 = vunpack.c.l.b16 %v354
    %v393 = vunpack.c.l.b16 %v355
    %v394 = vunpack.c.l.b16 %v356
    %v395 = vunpack.c.l.b16 %v357
    %v396 = vpack.c.b16 %v381, %v380
    %v397 = vpack.c.b16 %v383, %v382
    %v398 = vpack.c.b16 %v385, %v384
    %v399 = vpack.c.b16 %v387, %v386
    %v400 = vpack.c.b16 %v389, %v388
    %v401 = vpack.c.b16 %v391, %v390
    %v402 = vpack.c.b16 %v393, %v392
    %v403 = vpack.c.b16 %v395, %v394
    %412 = vmatprep.subr.bf16.mxu0 0
    %413 = vmatpush1.bf16.msra.mxu0 %v396
    %414 = vmatprep.subr.bf16.mxu0 0
    %415 = vmatpush1.bf16.msra.mxu0 %v397
    %416 = vmatprep.subr.bf16.mxu0 0
    %417 = vmatpush1.bf16.msra.mxu0 %v398
    %418 = vmatprep.subr.bf16.mxu0 0
    %419 = vmatpush1.bf16.msra.mxu0 %v399
    %420 = vmatprep.subr.bf16.mxu0 0
    %421 = vmatpush1.bf16.msra.mxu0 %v400
    %422 = vmatprep.subr.bf16.mxu0 0
    %423 = vmatpush1.bf16.msra.mxu0 %v401
    %424 = vmatprep.subr.bf16.mxu0 0
    %425 = vmatpush1.bf16.msra.mxu0 %v402
    %426 = vmatprep.subr.bf16.mxu0 0
    %427 = vmatpush1.bf16.msra.mxu0 %v403
    %428 = vmatprep.subr.bf16.mxu0 0
    %429 = vmatpush1.bf16.msra.mxu0 0
    %430 = vmatprep.subr.bf16.mxu0 0
    %431 = vmatpush1.bf16.msra.mxu0 0
    %432 = vmatprep.subr.bf16.mxu0 0
    %433 = vmatpush1.bf16.msra.mxu0 0
    %434 = vmatprep.subr.bf16.mxu0 0
    %435 = vmatpush1.bf16.msra.mxu0 0
    %436 = vmatprep.subr.bf16.mxu0 0
    %437 = vmatpush1.bf16.msra.mxu0 0
    %438 = vmatprep.subr.bf16.mxu0 0
    %439 = vmatpush1.bf16.msra.mxu0 0
    %440 = vmatprep.subr.bf16.mxu0 0
    %441 = vmatpush1.bf16.msra.mxu0 0
    %442 = vmatprep.subr.bf16.mxu0 0
    %443 = vmatpush1.bf16.msra.mxu0 0
    %444 = vmatprep.mubr.bf16.mxu0 0
    %445 = vmatmul.mubr.bf16.gmra.mrb[0].mxu0 %v359
    %v446 = vpop.f32.mrb[0].mxu0
    %v447 = vadd.f32 %v363, %v446
    %v448 = vpop.f32.mrb[0].mxu0
    %v449 = vpop.f32.mrb[0].mxu0
    %v450 = vpop.f32.mrb[0].mxu0
    %451 = vdwg.mxu0
    %v452 = vmax.f32 %v447, 0.0
    %s453 = scalar_lea.vmem [#allocation5], 256
    %v454 = vld [vmem:[%s453] sm:$0xf]
    %v455 = vld [vmem:[%s453 + $0x4] sm:$0xf]
    %v456 = vld [vmem:[%s453 + $0x8] sm:$0xf]
    %v457 = vld [vmem:[%s453 + $0xc] sm:$0xf]
    %v458 = vld [vmem:[%s453 + $0x10] sm:$0xf]
    %v459 = vld [vmem:[%s453 + $0x14] sm:$0xf]
    %v460 = vld [vmem:[%s453 + $0x18] sm:$0xf]
    %v461 = vld [vmem:[%s453 + $0x1c] sm:$0xf]
    %v462 = vld [vmem:[%s453 + $0x20] sm:$0xf]
    %v463 = vld [vmem:[%s453 + $0x24] sm:$0xf]
    %v464 = vld [vmem:[%s453 + $0x28] sm:$0xf]
    %v465 = vld [vmem:[%s453 + $0x2c] sm:$0xf]
    %v466 = vld [vmem:[%s453 + $0x30] sm:$0xf]
    %v467 = vld [vmem:[%s453 + $0x34] sm:$0xf]
    %v468 = vld [vmem:[%s453 + $0x38] sm:$0xf]
    %v469 = vld [vmem:[%s453 + $0x3c] sm:$0xf]
    %v470 = vld [vmem:[#allocation7 + $0x4] sm:$0x1]
    %v471 = vpack.c.bf16 %v452, %v452
    %v472 = vlaneseq
    %v473 = vshrl.u32 %v472, 7
    %v474 = vsub.s32 0, %v473
    %v475 = vrot.slane %v470, %v474
    %v492 = vunpack.c.l.b16 %v454
    %v493 = vunpack.c.l.b16 %v455
    %v494 = vunpack.c.l.b16 %v456
    %v495 = vunpack.c.l.b16 %v457
    %v496 = vunpack.c.l.b16 %v458
    %v497 = vunpack.c.l.b16 %v459
    %v498 = vunpack.c.l.b16 %v460
    %v499 = vunpack.c.l.b16 %v461
    %v500 = vunpack.c.l.b16 %v462
    %v501 = vunpack.c.l.b16 %v463
    %v502 = vunpack.c.l.b16 %v464
    %v503 = vunpack.c.l.b16 %v465
    %v504 = vunpack.c.l.b16 %v466
    %v505 = vunpack.c.l.b16 %v467
    %v506 = vunpack.c.l.b16 %v468
    %v507 = vunpack.c.l.b16 %v469
    %v508 = vpack.c.b16 %v493, %v492
    %v509 = vpack.c.b16 %v495, %v494
    %v510 = vpack.c.b16 %v497, %v496
    %v511 = vpack.c.b16 %v499, %v498
    %v512 = vpack.c.b16 %v501, %v500
    %v513 = vpack.c.b16 %v503, %v502
    %v514 = vpack.c.b16 %v505, %v504
    %v515 = vpack.c.b16 %v507, %v506
    %524 = vmatprep.subr.bf16.mxu0 0
    %525 = vmatpush1.bf16.msra.mxu0 %v508
    %526 = vmatprep.subr.bf16.mxu0 0
    %527 = vmatpush1.bf16.msra.mxu0 %v509
    %528 = vmatprep.subr.bf16.mxu0 0
    %529 = vmatpush1.bf16.msra.mxu0 %v510
    %530 = vmatprep.subr.bf16.mxu0 0
    %531 = vmatpush1.bf16.msra.mxu0 %v511
    %532 = vmatprep.subr.bf16.mxu0 0
    %533 = vmatpush1.bf16.msra.mxu0 %v512
    %534 = vmatprep.subr.bf16.mxu0 0
    %535 = vmatpush1.bf16.msra.mxu0 %v513
    %536 = vmatprep.subr.bf16.mxu0 0
    %537 = vmatpush1.bf16.msra.mxu0 %v514
    %538 = vmatprep.subr.bf16.mxu0 0
    %539 = vmatpush1.bf16.msra.mxu0 %v515
    %540 = vmatprep.subr.bf16.mxu0 0
    %541 = vmatpush1.bf16.msra.mxu0 0
    %542 = vmatprep.subr.bf16.mxu0 0
    %543 = vmatpush1.bf16.msra.mxu0 0
    %544 = vmatprep.subr.bf16.mxu0 0
    %545 = vmatpush1.bf16.msra.mxu0 0
    %546 = vmatprep.subr.bf16.mxu0 0
    %547 = vmatpush1.bf16.msra.mxu0 0
    %548 = vmatprep.subr.bf16.mxu0 0
    %549 = vmatpush1.bf16.msra.mxu0 0
    %550 = vmatprep.subr.bf16.mxu0 0
    %551 = vmatpush1.bf16.msra.mxu0 0
    %552 = vmatprep.subr.bf16.mxu0 0
    %553 = vmatpush1.bf16.msra.mxu0 0
    %554 = vmatprep.subr.bf16.mxu0 0
    %555 = vmatpush1.bf16.msra.mxu0 0
    %556 = vmatprep.mubr.bf16.mxu0 0
    %557 = vmatmul.mubr.bf16.gmra.mrb[0].mxu0 %v471
    %v558 = vpop.f32.mrb[0].mxu0
    %v559 = vadd.f32 %v475, %v558
    %v560 = vpop.f32.mrb[0].mxu0
    %v561 = vpop.f32.mrb[0].mxu0
    %v562 = vpop.f32.mrb[0].mxu0
    %563 = vdwg.mxu0
    %vm564 = vcmask 64512
    %565 = vst.msk [vmem:[%s4] sm:$0xff] %vm564, %v559
    %s566 = scalar_lea.vmem [#allocation5], 320
    %v567 = vld [vmem:[%s566] sm:$0xf]
    %v568 = vld [vmem:[%s566 + $0x4] sm:$0xf]
    %v569 = vld [vmem:[%s566 + $0x8] sm:$0xf]
    %v570 = vld [vmem:[%s566 + $0xc] sm:$0xf]
    %v571 = vld [vmem:[%s566 + $0x10] sm:$0xf]
    %v572 = vld [vmem:[%s566 + $0x14] sm:$0xf]
    %v573 = vld [vmem:[%s566 + $0x18] sm:$0xf]
    %v574 = vld [vmem:[%s566 + $0x1c] sm:$0xf]
    %v575 = vld [vmem:[%s566 + $0x20] sm:$0xf]
    %v576 = vld [vmem:[%s566 + $0x24] sm:$0xf]
    %v577 = vld [vmem:[%s566 + $0x28] sm:$0xf]
    %v578 = vld [vmem:[%s566 + $0x2c] sm:$0xf]
    %v579 = vld [vmem:[%s566 + $0x30] sm:$0xf]
    %v580 = vld [vmem:[%s566 + $0x34] sm:$0xf]
    %v581 = vld [vmem:[%s566 + $0x38] sm:$0xf]
    %v582 = vld [vmem:[%s566 + $0x3c] sm:$0xf]
    %v583 = vld [vmem:[#allocation7 + $0x5] sm:$0x1]
    %v584 = vpack.c.bf16 %v559, %v559
    %v585 = vlaneseq
    %v586 = vshrl.u32 %v585, 7
    %v587 = vsub.s32 0, %v586
    %v588 = vrot.slane %v583, %v587
    %v605 = vunpack.c.l.b16 %v567
    %v606 = vunpack.c.l.b16 %v568
    %v607 = vunpack.c.l.b16 %v569
    %v608 = vunpack.c.l.b16 %v570
    %v609 = vunpack.c.l.b16 %v571
    %v610 = vunpack.c.l.b16 %v572
    %v611 = vunpack.c.l.b16 %v573
    %v612 = vunpack.c.l.b16 %v574
    %v613 = vunpack.c.l.b16 %v575
    %v614 = vunpack.c.l.b16 %v576
    %v615 = vunpack.c.l.b16 %v577
    %v616 = vunpack.c.l.b16 %v578
    %v617 = vunpack.c.l.b16 %v579
    %v618 = vunpack.c.l.b16 %v580
    %v619 = vunpack.c.l.b16 %v581
    %v620 = vunpack.c.l.b16 %v582
    %v621 = vpack.c.b16 %v606, %v605
    %v622 = vpack.c.b16 %v608, %v607
    %v623 = vpack.c.b16 %v610, %v609
    %v624 = vpack.c.b16 %v612, %v611
    %v625 = vpack.c.b16 %v614, %v613
    %v626 = vpack.c.b16 %v616, %v615
    %v627 = vpack.c.b16 %v618, %v617
    %v628 = vpack.c.b16 %v620, %v619
    %637 = vmatprep.subr.bf16.mxu0 0
    %638 = vmatpush1.bf16.msra.mxu0 %v621
    %639 = vmatprep.subr.bf16.mxu0 0
    %640 = vmatpush1.bf16.msra.mxu0 %v622
    %641 = vmatprep.subr.bf16.mxu0 0
    %642 = vmatpush1.bf16.msra.mxu0 %v623
    %643 = vmatprep.subr.bf16.mxu0 0
    %644 = vmatpush1.bf16.msra.mxu0 %v624
    %645 = vmatprep.subr.bf16.mxu0 0
    %646 = vmatpush1.bf16.msra.mxu0 %v625
    %647 = vmatprep.subr.bf16.mxu0 0
    %648 = vmatpush1.bf16.msra.mxu0 %v626
    %649 = vmatprep.subr.bf16.mxu0 0
    %650 = vmatpush1.bf16.msra.mxu0 %v627
    %651 = vmatprep.subr.bf16.mxu0 0
    %652 = vmatpush1.bf16.msra.mxu0 %v628
    %653 = vmatprep.subr.bf16.mxu0 0
    %654 = vmatpush1.bf16.msra.mxu0 0
    %655 = vmatprep.subr.bf16.mxu0 0
    %656 = vmatpush1.bf16.msra.mxu0 0
    %657 = vmatprep.subr.bf16.mxu0 0
    %658 = vmatpush1.bf16.msra.mxu0 0
    %659 = vmatprep.subr.bf16.mxu0 0
    %660 = vmatpush1.bf16.msra.mxu0 0
    %661 = vmatprep.subr.bf16.mxu0 0
    %662 = vmatpush1.bf16.msra.mxu0 0
    %663 = vmatprep.subr.bf16.mxu0 0
    %664 = vmatpush1.bf16.msra.mxu0 0
    %665 = vmatprep.subr.bf16.mxu0 0
    %666 = vmatpush1.bf16.msra.mxu0 0
    %667 = vmatprep.subr.bf16.mxu0 0
    %668 = vmatpush1.bf16.msra.mxu0 0
    %669 = vmatprep.mubr.bf16.mxu0 0
    %670 = vmatmul.mubr.bf16.gmra.mrb[0].mxu0 %v584
    %v671 = vpop.f32.mrb[0].mxu0
    %v672 = vadd.f32 %v588, %v671
    %v673 = vpop.f32.mrb[0].mxu0
    %v674 = vpop.f32.mrb[0].mxu0
    %v675 = vpop.f32.mrb[0].mxu0
    %676 = vdwg.mxu0
    %v677 = vmax.f32 %v672, 0.0
    %s678 = scalar_lea.vmem [#allocation5], 384
    %v679 = vld [vmem:[%s678] sm:$0xf]
    %v680 = vld [vmem:[%s678 + $0x4] sm:$0xf]
    %v681 = vld [vmem:[%s678 + $0x8] sm:$0xf]
    %v682 = vld [vmem:[%s678 + $0xc] sm:$0xf]
    %v683 = vld [vmem:[%s678 + $0x10] sm:$0xf]
    %v684 = vld [vmem:[%s678 + $0x14] sm:$0xf]
    %v685 = vld [vmem:[%s678 + $0x18] sm:$0xf]
    %v686 = vld [vmem:[%s678 + $0x1c] sm:$0xf]
    %v687 = vld [vmem:[%s678 + $0x20] sm:$0xf]
    %v688 = vld [vmem:[%s678 + $0x24] sm:$0xf]
    %v689 = vld [vmem:[%s678 + $0x28] sm:$0xf]
    %v690 = vld [vmem:[%s678 + $0x2c] sm:$0xf]
    %v691 = vld [vmem:[%s678 + $0x30] sm:$0xf]
    %v692 = vld [vmem:[%s678 + $0x34] sm:$0xf]
    %v693 = vld [vmem:[%s678 + $0x38] sm:$0xf]
    %v694 = vld [vmem:[%s678 + $0x3c] sm:$0xf]
    %v695 = vld [vmem:[#allocation7 + $0x6] sm:$0x1]
    %v696 = vpack.c.bf16 %v677, %v677
    %v697 = vlaneseq
    %v698 = vshrl.u32 %v697, 7
    %v699 = vsub.s32 0, %v698
    %v700 = vrot.slane %v695, %v699
    %v717 = vunpack.c.l.b16 %v679
    %v718 = vunpack.c.l.b16 %v680
    %v719 = vunpack.c.l.b16 %v681
    %v720 = vunpack.c.l.b16 %v682
    %v721 = vunpack.c.l.b16 %v683
    %v722 = vunpack.c.l.b16 %v684
    %v723 = vunpack.c.l.b16 %v685
    %v724 = vunpack.c.l.b16 %v686
    %v725 = vunpack.c.l.b16 %v687
    %v726 = vunpack.c.l.b16 %v688
    %v727 = vunpack.c.l.b16 %v689
    %v728 = vunpack.c.l.b16 %v690
    %v729 = vunpack.c.l.b16 %v691
    %v730 = vunpack.c.l.b16 %v692
    %v731 = vunpack.c.l.b16 %v693
    %v732 = vunpack.c.l.b16 %v694
    %v733 = vpack.c.b16 %v718, %v717
    %v734 = vpack.c.b16 %v720, %v719
    %v735 = vpack.c.b16 %v722, %v721
    %v736 = vpack.c.b16 %v724, %v723
    %v737 = vpack.c.b16 %v726, %v725
    %v738 = vpack.c.b16 %v728, %v727
    %v739 = vpack.c.b16 %v730, %v729
    %v740 = vpack.c.b16 %v732, %v731
    %749 = vmatprep.subr.bf16.mxu0 0
    %750 = vmatpush1.bf16.msra.mxu0 %v733
    %751 = vmatprep.subr.bf16.mxu0 0
    %752 = vmatpush1.bf16.msra.mxu0 %v734
    %753 = vmatprep.subr.bf16.mxu0 0
    %754 = vmatpush1.bf16.msra.mxu0 %v735
    %755 = vmatprep.subr.bf16.mxu0 0
    %756 = vmatpush1.bf16.msra.mxu0 %v736
    %757 = vmatprep.subr.bf16.mxu0 0
    %758 = vmatpush1.bf16.msra.mxu0 %v737
    %759 = vmatprep.subr.bf16.mxu0 0
    %760 = vmatpush1.bf16.msra.mxu0 %v738
    %761 = vmatprep.subr.bf16.mxu0 0
    %762 = vmatpush1.bf16.msra.mxu0 %v739
    %763 = vmatprep.subr.bf16.mxu0 0
    %764 = vmatpush1.bf16.msra.mxu0 %v740
    %765 = vmatprep.subr.bf16.mxu0 0
    %766 = vmatpush1.bf16.msra.mxu0 0
    %767 = vmatprep.subr.bf16.mxu0 0
    %768 = vmatpush1.bf16.msra.mxu0 0
    %769 = vmatprep.subr.bf16.mxu0 0
    %770 = vmatpush1.bf16.msra.mxu0 0
    %771 = vmatprep.subr.bf16.mxu0 0
    %772 = vmatpush1.bf16.msra.mxu0 0
    %773 = vmatprep.subr.bf16.mxu0 0
    %774 = vmatpush1.bf16.msra.mxu0 0
    %775 = vmatprep.subr.bf16.mxu0 0
    %776 = vmatpush1.bf16.msra.mxu0 0
    %777 = vmatprep.subr.bf16.mxu0 0
    %778 = vmatpush1.bf16.msra.mxu0 0
    %779 = vmatprep.subr.bf16.mxu0 0
    %780 = vmatpush1.bf16.msra.mxu0 0
    %781 = vmatprep.mubr.bf16.mxu0 0
    %782 = vmatmul.mubr.bf16.gmra.mrb[0].mxu0 %v696
    %v783 = vpop.f32.mrb[0].mxu0
    %v784 = vadd.f32 %v700, %v783
    %v785 = vpop.f32.mrb[0].mxu0
    %v786 = vpop.f32.mrb[0].mxu0
    %v787 = vpop.f32.mrb[0].mxu0
    %788 = vdwg.mxu0
    %v789 = vmax.f32 %v784, 0.0
    %s790 = scalar_lea.vmem [#allocation5], 448
    %v791 = vld [vmem:[%s790] sm:$0xf]
    %v792 = vld [vmem:[%s790 + $0x4] sm:$0xf]
    %v793 = vld [vmem:[%s790 + $0x8] sm:$0xf]
    %v794 = vld [vmem:[%s790 + $0xc] sm:$0xf]
    %v795 = vld [vmem:[%s790 + $0x10] sm:$0xf]
    %v796 = vld [vmem:[%s790 + $0x14] sm:$0xf]
    %v797 = vld [vmem:[%s790 + $0x18] sm:$0xf]
    %v798 = vld [vmem:[%s790 + $0x1c] sm:$0xf]
    %v799 = vld [vmem:[%s790 + $0x20] sm:$0xf]
    %v800 = vld [vmem:[%s790 + $0x24] sm:$0xf]
    %v801 = vld [vmem:[%s790 + $0x28] sm:$0xf]
    %v802 = vld [vmem:[%s790 + $0x2c] sm:$0xf]
    %v803 = vld [vmem:[%s790 + $0x30] sm:$0xf]
    %v804 = vld [vmem:[%s790 + $0x34] sm:$0xf]
    %v805 = vld [vmem:[%s790 + $0x38] sm:$0xf]
    %v806 = vld [vmem:[%s790 + $0x3c] sm:$0xf]
    %v807 = vld [vmem:[#allocation7 + $0x7] sm:$0x1]
    %v808 = vpack.c.bf16 %v789, %v789
    %v809 = vlaneseq
    %v810 = vshrl.u32 %v809, 7
    %v811 = vsub.s32 0, %v810
    %v812 = vrot.slane %v807, %v811
    %v829 = vunpack.c.l.b16 %v791
    %v830 = vunpack.c.l.b16 %v792
    %v831 = vunpack.c.l.b16 %v793
    %v832 = vunpack.c.l.b16 %v794
    %v833 = vunpack.c.l.b16 %v795
    %v834 = vunpack.c.l.b16 %v796
    %v835 = vunpack.c.l.b16 %v797
    %v836 = vunpack.c.l.b16 %v798
    %v837 = vunpack.c.l.b16 %v799
    %v838 = vunpack.c.l.b16 %v800
    %v839 = vunpack.c.l.b16 %v801
    %v840 = vunpack.c.l.b16 %v802
    %v841 = vunpack.c.l.b16 %v803
    %v842 = vunpack.c.l.b16 %v804
    %v843 = vunpack.c.l.b16 %v805
    %v844 = vunpack.c.l.b16 %v806
    %v845 = vpack.c.b16 %v830, %v829
    %v846 = vpack.c.b16 %v832, %v831
    %v847 = vpack.c.b16 %v834, %v833
    %v848 = vpack.c.b16 %v836, %v835
    %v849 = vpack.c.b16 %v838, %v837
    %v850 = vpack.c.b16 %v840, %v839
    %v851 = vpack.c.b16 %v842, %v841
    %v852 = vpack.c.b16 %v844, %v843
    %861 = vmatprep.subr.bf16.mxu0 0
    %862 = vmatpush1.bf16.msra.mxu0 %v845
    %863 = vmatprep.subr.bf16.mxu0 0
    %864 = vmatpush1.bf16.msra.mxu0 %v846
    %865 = vmatprep.subr.bf16.mxu0 0
    %866 = vmatpush1.bf16.msra.mxu0 %v847
    %867 = vmatprep.subr.bf16.mxu0 0
    %868 = vmatpush1.bf16.msra.mxu0 %v848
    %869 = vmatprep.subr.bf16.mxu0 0
    %870 = vmatpush1.bf16.msra.mxu0 %v849
    %871 = vmatprep.subr.bf16.mxu0 0
    %872 = vmatpush1.bf16.msra.mxu0 %v850
    %873 = vmatprep.subr.bf16.mxu0 0
    %874 = vmatpush1.bf16.msra.mxu0 %v851
    %875 = vmatprep.subr.bf16.mxu0 0
    %876 = vmatpush1.bf16.msra.mxu0 %v852
    %877 = vmatprep.subr.bf16.mxu0 0
    %878 = vmatpush1.bf16.msra.mxu0 0
    %879 = vmatprep.subr.bf16.mxu0 0
    %880 = vmatpush1.bf16.msra.mxu0 0
    %881 = vmatprep.subr.bf16.mxu0 0
    %882 = vmatpush1.bf16.msra.mxu0 0
    %883 = vmatprep.subr.bf16.mxu0 0
    %884 = vmatpush1.bf16.msra.mxu0 0
    %885 = vmatprep.subr.bf16.mxu0 0
    %886 = vmatpush1.bf16.msra.mxu0 0
    %887 = vmatprep.subr.bf16.mxu0 0
    %888 = vmatpush1.bf16.msra.mxu0 0
    %889 = vmatprep.subr.bf16.mxu0 0
    %890 = vmatpush1.bf16.msra.mxu0 0
    %891 = vmatprep.subr.bf16.mxu0 0
    %892 = vmatpush1.bf16.msra.mxu0 0
    %893 = vmatprep.mubr.bf16.mxu0 0
    %894 = vmatmul.mubr.bf16.gmra.mrb[0].mxu0 %v808
    %v895 = vpop.f32.mrb[0].mxu0
    %v896 = vadd.f32 %v812, %v895
    %v897 = vpop.f32.mrb[0].mxu0
    %v898 = vpop.f32.mrb[0].mxu0
    %v899 = vpop.f32.mrb[0].mxu0
    %900 = vdwg.mxu0
    %v901 = vmax.f32 %v896, 0.0
    %s902 = scalar_lea.vmem [#allocation5], 512
    %v903 = vld [vmem:[%s902] sm:$0xf]
    %v904 = vld [vmem:[%s902 + $0x4] sm:$0xf]
    %v905 = vld [vmem:[%s902 + $0x8] sm:$0xf]
    %v906 = vld [vmem:[%s902 + $0xc] sm:$0xf]
    %v907 = vld [vmem:[%s902 + $0x10] sm:$0xf]
    %v908 = vld [vmem:[%s902 + $0x14] sm:$0xf]
    %v909 = vld [vmem:[%s902 + $0x18] sm:$0xf]
    %v910 = vld [vmem:[%s902 + $0x1c] sm:$0xf]
    %v911 = vld [vmem:[%s902 + $0x20] sm:$0xf]
    %v912 = vld [vmem:[%s902 + $0x24] sm:$0xf]
    %v913 = vld [vmem:[%s902 + $0x28] sm:$0xf]
    %v914 = vld [vmem:[%s902 + $0x2c] sm:$0xf]
    %v915 = vld [vmem:[%s902 + $0x30] sm:$0xf]
    %v916 = vld [vmem:[%s902 + $0x34] sm:$0xf]
    %v917 = vld [vmem:[%s902 + $0x38] sm:$0xf]
    %v918 = vld [vmem:[%s902 + $0x3c] sm:$0xf]
    %v919 = vld [vmem:[#allocation7 + $0x8] sm:$0x1]
    %v920 = vpack.c.bf16 %v901, %v901
    %v921 = vlaneseq
    %v922 = vshrl.u32 %v921, 7
    %v923 = vsub.s32 0, %v922
    %v924 = vrot.slane %v919, %v923
    %v941 = vunpack.c.l.b16 %v903
    %v942 = vunpack.c.l.b16 %v904
    %v943 = vunpack.c.l.b16 %v905
    %v944 = vunpack.c.l.b16 %v906
    %v945 = vunpack.c.l.b16 %v907
    %v946 = vunpack.c.l.b16 %v908
    %v947 = vunpack.c.l.b16 %v909
    %v948 = vunpack.c.l.b16 %v910
    %v949 = vunpack.c.l.b16 %v911
    %v950 = vunpack.c.l.b16 %v912
    %v951 = vunpack.c.l.b16 %v913
    %v952 = vunpack.c.l.b16 %v914
    %v953 = vunpack.c.l.b16 %v915
    %v954 = vunpack.c.l.b16 %v916
    %v955 = vunpack.c.l.b16 %v917
    %v956 = vunpack.c.l.b16 %v918
    %v957 = vpack.c.b16 %v942, %v941
    %v958 = vpack.c.b16 %v944, %v943
    %v959 = vpack.c.b16 %v946, %v945
    %v960 = vpack.c.b16 %v948, %v947
    %v961 = vpack.c.b16 %v950, %v949
    %v962 = vpack.c.b16 %v952, %v951
    %v963 = vpack.c.b16 %v954, %v953
    %v964 = vpack.c.b16 %v956, %v955
    %973 = vmatprep.subr.bf16.mxu0 0
    %974 = vmatpush1.bf16.msra.mxu0 %v957
    %975 = vmatprep.subr.bf16.mxu0 0
    %976 = vmatpush1.bf16.msra.mxu0 %v958
    %977 = vmatprep.subr.bf16.mxu0 0
    %978 = vmatpush1.bf16.msra.mxu0 %v959
    %979 = vmatprep.subr.bf16.mxu0 0
    %980 = vmatpush1.bf16.msra.mxu0 %v960
    %981 = vmatprep.subr.bf16.mxu0 0
    %982 = vmatpush1.bf16.msra.mxu0 %v961
    %983 = vmatprep.subr.bf16.mxu0 0
    %984 = vmatpush1.bf16.msra.mxu0 %v962
    %985 = vmatprep.subr.bf16.mxu0 0
    %986 = vmatpush1.bf16.msra.mxu0 %v963
    %987 = vmatprep.subr.bf16.mxu0 0
    %988 = vmatpush1.bf16.msra.mxu0 %v964
    %989 = vmatprep.subr.bf16.mxu0 0
    %990 = vmatpush1.bf16.msra.mxu0 0
    %991 = vmatprep.subr.bf16.mxu0 0
    %992 = vmatpush1.bf16.msra.mxu0 0
    %993 = vmatprep.subr.bf16.mxu0 0
    %994 = vmatpush1.bf16.msra.mxu0 0
    %995 = vmatprep.subr.bf16.mxu0 0
    %996 = vmatpush1.bf16.msra.mxu0 0
    %997 = vmatprep.subr.bf16.mxu0 0
    %998 = vmatpush1.bf16.msra.mxu0 0
    %999 = vmatprep.subr.bf16.mxu0 0
    %1000 = vmatpush1.bf16.msra.mxu0 0
    %1001 = vmatprep.subr.bf16.mxu0 0
    %1002 = vmatpush1.bf16.msra.mxu0 0
    %1003 = vmatprep.subr.bf16.mxu0 0
    %1004 = vmatpush1.bf16.msra.mxu0 0
    %1005 = vmatprep.mubr.bf16.mxu0 0
    %1006 = vmatmul.mubr.bf16.gmra.mrb[0].mxu0 %v920
    %v1007 = vpop.f32.mrb[0].mxu0
    %v1008 = vadd.f32 %v924, %v1007
    %v1009 = vpop.f32.mrb[0].mxu0
    %v1010 = vpop.f32.mrb[0].mxu0
    %v1011 = vpop.f32.mrb[0].mxu0
    %1012 = vdwg.mxu0
    %v1013 = vmax.f32 %v1008, 0.0
    %s1014 = scalar_lea.vmem [#allocation5], 576
    %v1015 = vld [vmem:[%s1014] sm:$0xf]
    %v1016 = vld [vmem:[%s1014 + $0x4] sm:$0xf]
    %v1017 = vld [vmem:[%s1014 + $0x8] sm:$0xf]
    %v1018 = vld [vmem:[%s1014 + $0xc] sm:$0xf]
    %v1019 = vld [vmem:[%s1014 + $0x10] sm:$0xf]
    %v1020 = vld [vmem:[%s1014 + $0x14] sm:$0xf]
    %v1021 = vld [vmem:[%s1014 + $0x18] sm:$0xf]
    %v1022 = vld [vmem:[%s1014 + $0x1c] sm:$0xf]
    %v1023 = vld [vmem:[%s1014 + $0x20] sm:$0xf]
    %v1024 = vld [vmem:[%s1014 + $0x24] sm:$0xf]
    %v1025 = vld [vmem:[%s1014 + $0x28] sm:$0xf]
    %v1026 = vld [vmem:[%s1014 + $0x2c] sm:$0xf]
    %v1027 = vld [vmem:[%s1014 + $0x30] sm:$0xf]
    %v1028 = vld [vmem:[%s1014 + $0x34] sm:$0xf]
    %v1029 = vld [vmem:[%s1014 + $0x38] sm:$0xf]
    %v1030 = vld [vmem:[%s1014 + $0x3c] sm:$0xf]
    %v1031 = vld [vmem:[#allocation7 + $0x9] sm:$0x1]
    %v1032 = vpack.c.bf16 %v1013, %v1013
    %v1033 = vlaneseq
    %v1034 = vshrl.u32 %v1033, 7
    %v1035 = vsub.s32 0, %v1034
    %v1036 = vrot.slane %v1031, %v1035
    %v1053 = vunpack.c.l.b16 %v1015
    %v1054 = vunpack.c.l.b16 %v1016
    %v1055 = vunpack.c.l.b16 %v1017
    %v1056 = vunpack.c.l.b16 %v1018
    %v1057 = vunpack.c.l.b16 %v1019
    %v1058 = vunpack.c.l.b16 %v1020
    %v1059 = vunpack.c.l.b16 %v1021
    %v1060 = vunpack.c.l.b16 %v1022
    %v1061 = vunpack.c.l.b16 %v1023
    %v1062 = vunpack.c.l.b16 %v1024
    %v1063 = vunpack.c.l.b16 %v1025
    %v1064 = vunpack.c.l.b16 %v1026
    %v1065 = vunpack.c.l.b16 %v1027
    %v1066 = vunpack.c.l.b16 %v1028
    %v1067 = vunpack.c.l.b16 %v1029
    %v1068 = vunpack.c.l.b16 %v1030
    %v1069 = vpack.c.b16 %v1054, %v1053
    %v1070 = vpack.c.b16 %v1056, %v1055
    %v1071 = vpack.c.b16 %v1058, %v1057
    %v1072 = vpack.c.b16 %v1060, %v1059
    %v1073 = vpack.c.b16 %v1062, %v1061
    %v1074 = vpack.c.b16 %v1064, %v1063
    %v1075 = vpack.c.b16 %v1066, %v1065
    %v1076 = vpack.c.b16 %v1068, %v1067
    %1085 = vmatprep.subr.bf16.mxu0 0
    %1086 = vmatpush1.bf16.msra.mxu0 %v1069
    %1087 = vmatprep.subr.bf16.mxu0 0
    %1088 = vmatpush1.bf16.msra.mxu0 %v1070
    %1089 = vmatprep.subr.bf16.mxu0 0
    %1090 = vmatpush1.bf16.msra.mxu0 %v1071
    %1091 = vmatprep.subr.bf16.mxu0 0
    %1092 = vmatpush1.bf16.msra.mxu0 %v1072
    %1093 = vmatprep.subr.bf16.mxu0 0
    %1094 = vmatpush1.bf16.msra.mxu0 %v1073
    %1095 = vmatprep.subr.bf16.mxu0 0
    %1096 = vmatpush1.bf16.msra.mxu0 %v1074
    %1097 = vmatprep.subr.bf16.mxu0 0
    %1098 = vmatpush1.bf16.msra.mxu0 %v1075
    %1099 = vmatprep.subr.bf16.mxu0 0
    %1100 = vmatpush1.bf16.msra.mxu0 %v1076
    %1101 = vmatprep.subr.bf16.mxu0 0
    %1102 = vmatpush1.bf16.msra.mxu0 0
    %1103 = vmatprep.subr.bf16.mxu0 0
    %1104 = vmatpush1.bf16.msra.mxu0 0
    %1105 = vmatprep.subr.bf16.mxu0 0
    %1106 = vmatpush1.bf16.msra.mxu0 0
    %1107 = vmatprep.subr.bf16.mxu0 0
    %1108 = vmatpush1.bf16.msra.mxu0 0
    %1109 = vmatprep.subr.bf16.mxu0 0
    %1110 = vmatpush1.bf16.msra.mxu0 0
    %1111 = vmatprep.subr.bf16.mxu0 0
    %1112 = vmatpush1.bf16.msra.mxu0 0
    %1113 = vmatprep.subr.bf16.mxu0 0
    %1114 = vmatpush1.bf16.msra.mxu0 0
    %1115 = vmatprep.subr.bf16.mxu0 0
    %1116 = vmatpush1.bf16.msra.mxu0 0
    %1117 = vmatprep.mubr.bf16.mxu0 0
    %1118 = vmatmul.mubr.bf16.gmra.mrb[0].mxu0 %v1032
    %v1119 = vpop.f32.mrb[0].mxu0
    %v1120 = vadd.f32 %v1036, %v1119
    %v1121 = vpop.f32.mrb[0].mxu0
    %v1122 = vpop.f32.mrb[0].mxu0
    %v1123 = vpop.f32.mrb[0].mxu0
    %1124 = vdwg.mxu0
    %1125 = vst.msk [vmem:[#allocation8] sm:$0xff] %vm72, %v1120
    // Predicated region
    $region26: #{_fwd.1} parent=1 // pred_check
      _
    $region27: #{_fwd.1} parent=1 // pred_check_branch
      %1127 = sbr.rel (0) target = $region29
    $region28: #{_fwd.1} parent=1 // pred_region
      %s1129 = ssub.s32 128, 128
      %1130 = vsyncadd [#allocation4], %s1129
      %s1132 = sshll.u32 [#allocation8], 4
      %s1133 = int_to_ptr.vmem [resolvable:$true] %s1132
      %1135 = dma.vmem_to_hbm [thread:$0]  %s1133, 128, %s3, [#allocation4]
    $region29: #{_fwd.1} parent=1 // pred_fallthru
      _
    // Predicated region
    $region30: #{_fwd.1} parent=1 // pred_check
      _
    $region31: #{_fwd.1} parent=1 // pred_check_branch
      %1137 = sbr.rel (0) target = $region33
    $region32: #{_fwd.1} parent=1 // pred_region
      _
    $region33: #{_fwd.1} parent=1 // pred_fallthru
      _
    // Predicated region
    $region34: #{_fwd.1} parent=1 // pred_check
      _
    $region35: #{_fwd.1} parent=1 // pred_check_branch
      %1139 = sbr.rel (0) target = $region37
    $region36: #{_fwd.1} parent=1 // pred_region
      %1140 = dma.done [#allocation4], 128
    $region37: #{_fwd.1} parent=1 // pred_fallthru
      _
    // Predicated region
    $region38: #{_fwd.1} parent=1 // pred_check
      _
    $region39: #{_fwd.1} parent=1 // pred_check_branch
      %1142 = sbr.rel (0) target = $region41
    $region40: #{_fwd.1} parent=1 // pred_region
      _
    $region41: #{_fwd.1} parent=1 // pred_fallthru
      _
    %1143 = vsyncpa [#allocation3], 1
    %1144 = vsyncpa [#allocation6], 1
    %1145 = vsyncpa [#allocation4], 1

// kernel: _fwd.1
$region0: #{_fwd.1}
  #allocation0 [shape = 'u32[]', space=smem, size = 0x4, offset = 0x4, fixed_abs, tag = 'smem constant byte address 0x4 - core index']
  #allocation1 [shape = 'u32[144,128]{1,0:T(1,128)}', space=vmem, size = 0x12000, scoped, tag = 'internal scratch']
  %s0 = inlined_call_operand.hbm [shape: f32[8,16], index: 0, kind: input, shape index: {}]
  %s1 = inlined_call_operand.hbm [shape: bf16[10,128,128], index: 1, kind: input, shape index: {}]
  %s2 = inlined_call_operand.hbm [shape: f32[16,128], index: 2, kind: input, shape index: {}]
  %s3 = inlined_call_operand.hbm [shape: f32[8,16], index: 3, kind: output, shape index: {0}]
  %s4 = inlined_call_operand.vmem [shape: f32[8,8], index: 4, kind: output, shape index: {1}]
  %5 = xla_tuple %s3, %s4
  %s6 = sld [smem:[#allocation0]]
  $region42: #{_fwd.1} parent=0
    _
  %s8 = ssub.s32 1, %s6
  %s9 = scalar_select 0, %s8, %s6
  $region1: #{_fwd.1} parent=0
    #allocation2 [shape = 'u8[4096]{0}', space=vmem, size = 0x1000, scoped, tag = 'input window, operand 0, single buffered']
    #allocation3 [shape = 's32[1]{0}', space=sflag, size = 0x4, scoped, tag = 'scoped memory for _fwd.1']
    #allocation4 [shape = 's32[1]{0}', space=sflag, size = 0x4, scoped, tag = 'scoped memory for _fwd.1']
    #allocation5 [shape = 'u8[327680]{0}', space=vmem, size = 0x50000, scoped, tag = 'input window, operand 1, single buffered']
    #allocation6 [shape = 's32[1]{0}', space=sflag, size = 0x4, scoped, tag = 'scoped memory for _fwd.1']
    #allocation7 [shape = 'u8[8192]{0}', space=vmem, size = 0x2000, scoped, tag = 'input window, operand 2, single buffered']
    #allocation8 [shape = 'u8[4096]{0}', space=vmem, size = 0x1000, scoped, tag = 'output window, operand 0, single buffered']
    %10 = vsyncpa [#allocation3], 0
    %11 = vsyncpa [#allocation6], 0
    %12 = vsyncpa [#allocation4], 0
    // Predicated region
    $region2: #{_fwd.1} parent=1 // pred_check
      _
    $region3: #{_fwd.1} parent=1 // pred_check_branch
      %14 = sbr.rel (0) target = $region5
    $region4: #{_fwd.1} parent=1 // pred_region
      %s16 = ssub.s32 128, 128
      %17 = vsyncadd [#allocation3], %s16
      %s19 = sshll.u32 [#allocation2], 4
      %s20 = int_to_ptr.vmem [resolvable:$true] %s19
      %22 = dma.hbm_to_vmem [thread:$0]  %s0, 128, %s20, [#allocation3]
    $region5: #{_fwd.1} parent=1 // pred_fallthru
      _
    // Predicated region
    $region6: #{_fwd.1} parent=1 // pred_check
      _
    $region7: #{_fwd.1} parent=1 // pred_check_branch
      %24 = sbr.rel (0) target = $region9
    $region8: #{_fwd.1} parent=1 // pred_region
      %s26 = ssub.s32 10240, 10240
      %27 = vsyncadd [#allocation6], %s26
      %s28 = sshll.u32 [#allocation5], 4
      %s29 = int_to_ptr.vmem [resolvable:$true] %s28
      %34 = dma.hbm_to_vmem [thread:$0]  %s1, 10240, %s29, [#allocation6], 64, 64, 4
    $region9: #{_fwd.1} parent=1 // pred_fallthru
      _
    // Predicated region
    $region10: #{_fwd.1} parent=1 // pred_check
      _
    $region11: #{_fwd.1} parent=1 // pred_check_branch
      %36 = sbr.rel (0) target = $region13
    $region12: #{_fwd.1} parent=1 // pred_region
      %s38 = ssub.s32 256, 256
      %39 = vsyncadd [#allocation6], %s38
      %s40 = sshll.u32 [#allocation7], 4
      %s41 = int_to_ptr.vmem [resolvable:$true] %s40
      %46 = dma.hbm_to_vmem [thread:$0]  %s2, 256, %s41, [#allocation6], 128, 128, 8
    $region13: #{_fwd.1} parent=1 // pred_fallthru
      _
    // Predicated region
    $region14: #{_fwd.1} parent=1 // pred_check
      _
    $region15: #{_fwd.1} parent=1 // pred_check_branch
      %48 = sbr.rel (0) target = $region17
    $region16: #{_fwd.1} parent=1 // pred_region
      %49 = dma.done [#allocation3], 128
    $region17: #{_fwd.1} parent=1 // pred_fallthru
      _
    // Predicated region
    $region18: #{_fwd.1} parent=1 // pred_check
      _
    $region19: #{_fwd.1} parent=1 // pred_check_branch
      %51 = sbr.rel (0) target = $region21
    $region20: #{_fwd.1} parent=1 // pred_region
      %52 = dma.done [#allocation6], 10240
    $region21: #{_fwd.1} parent=1 // pred_fallthru
      _
    // Predicated region
    $region22: #{_fwd.1} parent=1 // pred_check
      _
    $region23: #{_fwd.1} parent=1 // pred_check_branch
      %54 = sbr.rel (0) target = $region25
    $region24: #{_fwd.1} parent=1 // pred_region
      %55 = dma.done [#allocation6], 256
    $region25: #{_fwd.1} parent=1 // pred_fallthru
      _
    %v57 = vld [vmem:[#allocation2] sm:$0xff]
    %v58 = vld [vmem:[#allocation5] sm:$0xf]
    %v59 = vld [vmem:[#allocation5 + $0x4] sm:$0xf]
    %v60 = vld [vmem:[#allocation7] sm:$0x1]
    %v61 = vpack.c.bf16 %v57, %v57
    %v62 = vlaneseq
    %v63 = vshrl.u32 %v62, 7
    %v64 = vsub.s32 0, %v63
    %v65 = vrot.slane %v60, %v64
    %v68 = vunpack.c.l.b16 %v58
    %v69 = vunpack.c.l.b16 %v59
    %v70 = vpack.c.b16 %v69, %v68
    %vm72 = vcmask 130048
    %v74 = vsel %vm72, %v61, 0
    %76 = vmatprep.subr.bf16.mxu0 0
    %77 = vmatpush1.bf16.msra.mxu0 %v70
    %78 = vmatprep.subr.bf16.mxu0 0
    %79 = vmatpush1.bf16.msra.mxu0 0
    %80 = vmatprep.subr.bf16.mxu0 0
    %81 = vmatpush1.bf16.msra.mxu0 0
    %82 = vmatprep.subr.bf16.mxu0 0
    %83 = vmatpush1.bf16.msra.mxu0 0
    %84 = vmatprep.subr.bf16.mxu0 0
    %85 = vmatpush1.bf16.msra.mxu0 0
    %86 = vmatprep.subr.bf16.mxu0 0
    %87 = vmatpush1.bf16.msra.mxu0 0
    %88 = vmatprep.subr.bf16.mxu0 0
    %89 = vmatpush1.bf16.msra.mxu0 0
    %90 = vmatprep.subr.bf16.mxu0 0
    %91 = vmatpush1.bf16.msra.mxu0 0
    %92 = vmatprep.subr.bf16.mxu0 0
    %93 = vmatpush1.bf16.msra.mxu0 0
    %94 = vmatprep.subr.bf16.mxu0 0
    %95 = vmatpush1.bf16.msra.mxu0 0
    %96 = vmatprep.subr.bf16.mxu0 0
    %97 = vmatpush1.bf16.msra.mxu0 0
    %98 = vmatprep.subr.bf16.mxu0 0
    %99 = vmatpush1.bf16.msra.mxu0 0
    %100 = vmatprep.subr.bf16.mxu0 0
    %101 = vmatpush1.bf16.msra.mxu0 0
    %102 = vmatprep.subr.bf16.mxu0 0
    %103 = vmatpush1.bf16.msra.mxu0 0
    %104 = vmatprep.subr.bf16.mxu0 0
    %105 = vmatpush1.bf16.msra.mxu0 0
    %106 = vmatprep.subr.bf16.mxu0 0
    %107 = vmatpush1.bf16.msra.mxu0 0
    %108 = vmatprep.mubr.bf16.mxu0 0
    %109 = vmatmul.mubr.bf16.gmra.mrb[0].mxu0 %v74
    %v110 = vpop.f32.mrb[0].mxu0
    %v111 = vadd.f32 %v65, %v110
    %v112 = vpop.f32.mrb[0].mxu0
    %v113 = vpop.f32.mrb[0].mxu0
    %v114 = vpop.f32.mrb[0].mxu0
    %115 = vdwg.mxu0
    %v116 = vmax.f32 %v111, 0.0
    %s117 = scalar_lea.vmem [#allocation5], 64
    %v118 = vld [vmem:[%s117] sm:$0xf]
    %v119 = vld [vmem:[%s117 + $0x4] sm:$0xf]
    %v120 = vld [vmem:[%s117 + $0x8] sm:$0xf]
    %v121 = vld [vmem:[%s117 + $0xc] sm:$0xf]
    %v122 = vld [vmem:[%s117 + $0x10] sm:$0xf]
    %v123 = vld [vmem:[%s117 + $0x14] sm:$0xf]
    %v124 = vld [vmem:[%s117 + $0x18] sm:$0xf]
    %v125 = vld [vmem:[%s117 + $0x1c] sm:$0xf]
    %v126 = vld [vmem:[%s117 + $0x20] sm:$0xf]
    %v127 = vld [vmem:[%s117 + $0x24] sm:$0xf]
    %v128 = vld [vmem:[%s117 + $0x28] sm:$0xf]
    %v129 = vld [vmem:[%s117 + $0x2c] sm:$0xf]
    %v130 = vld [vmem:[%s117 + $0x30] sm:$0xf]
    %v131 = vld [vmem:[%s117 + $0x34] sm:$0xf]
    %v132 = vld [vmem:[%s117 + $0x38] sm:$0xf]
    %v133 = vld [vmem:[%s117 + $0x3c] sm:$0xf]
    %v134 = vld [vmem:[#allocation7 + $0x1] sm:$0x1]
    %v135 = vpack.c.bf16 %v116, %v116
    %v136 = vlaneseq
    %v137 = vshrl.u32 %v136, 7
    %v138 = vsub.s32 0, %v137
    %v139 = vrot.slane %v134, %v138
    %v156 = vunpack.c.l.b16 %v118
    %v157 = vunpack.c.l.b16 %v119
    %v158 = vunpack.c.l.b16 %v120
    %v159 = vunpack.c.l.b16 %v121
    %v160 = vunpack.c.l.b16 %v122
    %v161 = vunpack.c.l.b16 %v123
    %v162 = vunpack.c.l.b16 %v124
    %v163 = vunpack.c.l.b16 %v125
    %v164 = vunpack.c.l.b16 %v126
    %v165 = vunpack.c.l.b16 %v127
    %v166 = vunpack.c.l.b16 %v128
    %v167 = vunpack.c.l.b16 %v129
    %v168 = vunpack.c.l.b16 %v130
    %v169 = vunpack.c.l.b16 %v131
    %v170 = vunpack.c.l.b16 %v132
    %v171 = vunpack.c.l.b16 %v133
    %v172 = vpack.c.b16 %v157, %v156
    %v173 = vpack.c.b16 %v159, %v158
    %v174 = vpack.c.b16 %v161, %v160
    %v175 = vpack.c.b16 %v163, %v162
    %v176 = vpack.c.b16 %v165, %v164
    %v177 = vpack.c.b16 %v167, %v166
    %v178 = vpack.c.b16 %v169, %v168
    %v179 = vpack.c.b16 %v171, %v170
    %188 = vmatprep.subr.bf16.mxu0 0
    %189 = vmatpush1.bf16.msra.mxu0 %v172
    %190 = vmatprep.subr.bf16.mxu0 0
    %191 = vmatpush1.bf16.msra.mxu0 %v173
    %192 = vmatprep.subr.bf16.mxu0 0
    %193 = vmatpush1.bf16.msra.mxu0 %v174
    %194 = vmatprep.subr.bf16.mxu0 0
    %195 = vmatpush1.bf16.msra.mxu0 %v175
    %196 = vmatprep.subr.bf16.mxu0 0
    %197 = vmatpush1.bf16.msra.mxu0 %v176
    %198 = vmatprep.subr.bf16.mxu0 0
    %199 = vmatpush1.bf16.msra.mxu0 %v177
    %200 = vmatprep.subr.bf16.mxu0 0
    %201 = vmatpush1.bf16.msra.mxu0 %v178
    %202 = vmatprep.subr.bf16.mxu0 0
    %203 = vmatpush1.bf16.msra.mxu0 %v179
    %204 = vmatprep.subr.bf16.mxu0 0
    %205 = vmatpush1.bf16.msra.mxu0 0
    %206 = vmatprep.subr.bf16.mxu0 0
    %207 = vmatpush1.bf16.msra.mxu0 0
    %208 = vmatprep.subr.bf16.mxu0 0
    %209 = vmatpush1.bf16.msra.mxu0 0
    %210 = vmatprep.subr.bf16.mxu0 0
    %211 = vmatpush1.bf16.msra.mxu0 0
    %212 = vmatprep.subr.bf16.mxu0 0
    %213 = vmatpush1.bf16.msra.mxu0 0
    %214 = vmatprep.subr.bf16.mxu0 0
    %215 = vmatpush1.bf16.msra.mxu0 0
    %216 = vmatprep.subr.bf16.mxu0 0
    %217 = vmatpush1.bf16.msra.mxu0 0
    %218 = vmatprep.subr.bf16.mxu0 0
    %219 = vmatpush1.bf16.msra.mxu0 0
    %220 = vmatprep.mubr.bf16.mxu0 0
    %221 = vmatmul.mubr.bf16.gmra.mrb[0].mxu0 %v135
    %v222 = vpop.f32.mrb[0].mxu0
    %v223 = vadd.f32 %v139, %v222
    %v224 = vpop.f32.mrb[0].mxu0
    %v225 = vpop.f32.mrb[0].mxu0
    %v226 = vpop.f32.mrb[0].mxu0
    %227 = vdwg.mxu0
    %v228 = vmax.f32 %v223, 0.0
    %s229 = scalar_lea.vmem [#allocation5], 128
    %v230 = vld [vmem:[%s229] sm:$0xf]
    %v231 = vld [vmem:[%s229 + $0x4] sm:$0xf]
    %v232 = vld [vmem:[%s229 + $0x8] sm:$0xf]
    %v233 = vld [vmem:[%s229 + $0xc] sm:$0xf]
    %v234 = vld [vmem:[%s229 + $0x10] sm:$0xf]
    %v235 = vld [vmem:[%s229 + $0x14] sm:$0xf]
    %v236 = vld [vmem:[%s229 + $0x18] sm:$0xf]
    %v237 = vld [vmem:[%s229 + $0x1c] sm:$0xf]
    %v238 = vld [vmem:[%s229 + $0x20] sm:$0xf]
    %v239 = vld [vmem:[%s229 + $0x24] sm:$0xf]
    %v240 = vld [vmem:[%s229 + $0x28] sm:$0xf]
    %v241 = vld [vmem:[%s229 + $0x2c] sm:$0xf]
    %v242 = vld [vmem:[%s229 + $0x30] sm:$0xf]
    %v243 = vld [vmem:[%s229 + $0x34] sm:$0xf]
    %v244 = vld [vmem:[%s229 + $0x38] sm:$0xf]
    %v245 = vld [vmem:[%s229 + $0x3c] sm:$0xf]
    %v246 = vld [vmem:[#allocation7 + $0x2] sm:$0x1]
    %v247 = vpack.c.bf16 %v228, %v228
    %v248 = vlaneseq
    %v249 = vshrl.u32 %v248, 7
    %v250 = vsub.s32 0, %v249
    %v251 = vrot.slane %v246, %v250
    %v268 = vunpack.c.l.b16 %v230
    %v269 = vunpack.c.l.b16 %v231
    %v270 = vunpack.c.l.b16 %v232
    %v271 = vunpack.c.l.b16 %v233
    %v272 = vunpack.c.l.b16 %v234
    %v273 = vunpack.c.l.b16 %v235
    %v274 = vunpack.c.l.b16 %v236
    %v275 = vunpack.c.l.b16 %v237
    %v276 = vunpack.c.l.b16 %v238
    %v277 = vunpack.c.l.b16 %v239
    %v278 = vunpack.c.l.b16 %v240
    %v279 = vunpack.c.l.b16 %v241
    %v280 = vunpack.c.l.b16 %v242
    %v281 = vunpack.c.l.b16 %v243
    %v282 = vunpack.c.l.b16 %v244
    %v283 = vunpack.c.l.b16 %v245
    %v284 = vpack.c.b16 %v269, %v268
    %v285 = vpack.c.b16 %v271, %v270
    %v286 = vpack.c.b16 %v273, %v272
    %v287 = vpack.c.b16 %v275, %v274
    %v288 = vpack.c.b16 %v277, %v276
    %v289 = vpack.c.b16 %v279, %v278
    %v290 = vpack.c.b16 %v281, %v280
    %v291 = vpack.c.b16 %v283, %v282
    %300 = vmatprep.subr.bf16.mxu0 0
    %301 = vmatpush1.bf16.msra.mxu0 %v284
    %302 = vmatprep.subr.bf16.mxu0 0
    %303 = vmatpush1.bf16.msra.mxu0 %v285
    %304 = vmatprep.subr.bf16.mxu0 0
    %305 = vmatpush1.bf16.msra.mxu0 %v286
    %306 = vmatprep.subr.bf16.mxu0 0
    %307 = vmatpush1.bf16.msra.mxu0 %v287
    %308 = vmatprep.subr.bf16.mxu0 0
    %309 = vmatpush1.bf16.msra.mxu0 %v288
    %310 = vmatprep.subr.bf16.mxu0 0
    %311 = vmatpush1.bf16.msra.mxu0 %v289
    %312 = vmatprep.subr.bf16.mxu0 0
    %313 = vmatpush1.bf16.msra.mxu0 %v290
    %314 = vmatprep.subr.bf16.mxu0 0
    %315 = vmatpush1.bf16.msra.mxu0 %v291
    %316 = vmatprep.subr.bf16.mxu0 0
    %317 = vmatpush1.bf16.msra.mxu0 0
    %318 = vmatprep.subr.bf16.mxu0 0
    %319 = vmatpush1.bf16.msra.mxu0 0
    %320 = vmatprep.subr.bf16.mxu0 0
    %321 = vmatpush1.bf16.msra.mxu0 0
    %322 = vmatprep.subr.bf16.mxu0 0
    %323 = vmatpush1.bf16.msra.mxu0 0
    %324 = vmatprep.subr.bf16.mxu0 0
    %325 = vmatpush1.bf16.msra.mxu0 0
    %326 = vmatprep.subr.bf16.mxu0 0
    %327 = vmatpush1.bf16.msra.mxu0 0
    %328 = vmatprep.subr.bf16.mxu0 0
    %329 = vmatpush1.bf16.msra.mxu0 0
    %330 = vmatprep.subr.bf16.mxu0 0
    %331 = vmatpush1.bf16.msra.mxu0 0
    %332 = vmatprep.mubr.bf16.mxu0 0
    %333 = vmatmul.mubr.bf16.gmra.mrb[0].mxu0 %v247
    %v334 = vpop.f32.mrb[0].mxu0
    %v335 = vadd.f32 %v251, %v334
    %v336 = vpop.f32.mrb[0].mxu0
    %v337 = vpop.f32.mrb[0].mxu0
    %v338 = vpop.f32.mrb[0].mxu0
    %339 = vdwg.mxu0
    %v340 = vmax.f32 %v335, 0.0
    %s341 = scalar_lea.vmem [#allocation5], 192
    %v342 = vld [vmem:[%s341] sm:$0xf]
    %v343 = vld [vmem:[%s341 + $0x4] sm:$0xf]
    %v344 = vld [vmem:[%s341 + $0x8] sm:$0xf]
    %v345 = vld [vmem:[%s341 + $0xc] sm:$0xf]
    %v346 = vld [vmem:[%s341 + $0x10] sm:$0xf]
    %v347 = vld [vmem:[%s341 + $0x14] sm:$0xf]
    %v348 = vld [vmem:[%s341 + $0x18] sm:$0xf]
    %v349 = vld [vmem:[%s341 + $0x1c] sm:$0xf]
    %v350 = vld [vmem:[%s341 + $0x20] sm:$0xf]
    %v351 = vld [vmem:[%s341 + $0x24] sm:$0xf]
    %v352 = vld [vmem:[%s341 + $0x28] sm:$0xf]
    %v353 = vld [vmem:[%s341 + $0x2c] sm:$0xf]
    %v354 = vld [vmem:[%s341 + $0x30] sm:$0xf]
    %v355 = vld [vmem:[%s341 + $0x34] sm:$0xf]
    %v356 = vld [vmem:[%s341 + $0x38] sm:$0xf]
    %v357 = vld [vmem:[%s341 + $0x3c] sm:$0xf]
    %v358 = vld [vmem:[#allocation7 + $0x3] sm:$0x1]
    %v359 = vpack.c.bf16 %v340, %v340
    %v360 = vlaneseq
    %v361 = vshrl.u32 %v360, 7
    %v362 = vsub.s32 0, %v361
    %v363 = vrot.slane %v358, %v362
    %v380 = vunpack.c.l.b16 %v342
    %v381 = vunpack.c.l.b16 %v343
    %v382 = vunpack.c.l.b16 %v344
    %v383 = vunpack.c.l.b16 %v345
    %v384 = vunpack.c.l.b16 %v346
    %v385 = vunpack.c.l.b16 %v347
    %v386 = vunpack.c.l.b16 %v348
    %v387 = vunpack.c.l.b16 %v349
    %v388 = vunpack.c.l.b16 %v350
    %v389 = vunpack.c.l.b16 %v351
    %v390 = vunpack.c.l.b16 %v352
    %v391 = vunpack.c.l.b16 %v353
    %v392 = vunpack.c.l.b16 %v354
    %v393 = vunpack.c.l.b16 %v355
    %v394 = vunpack.c.l.b16 %v356
    %v395 = vunpack.c.l.b16 %v357
    %v396 = vpack.c.b16 %v381, %v380
    %v397 = vpack.c.b16 %v383, %v382
    %v398 = vpack.c.b16 %v385, %v384
    %v399 = vpack.c.b16 %v387, %v386
    %v400 = vpack.c.b16 %v389, %v388
    %v401 = vpack.c.b16 %v391, %v390
    %v402 = vpack.c.b16 %v393, %v392
    %v403 = vpack.c.b16 %v395, %v394
    %412 = vmatprep.subr.bf16.mxu0 0
    %413 = vmatpush1.bf16.msra.mxu0 %v396
    %414 = vmatprep.subr.bf16.mxu0 0
    %415 = vmatpush1.bf16.msra.mxu0 %v397
    %416 = vmatprep.subr.bf16.mxu0 0
    %417 = vmatpush1.bf16.msra.mxu0 %v398
    %418 = vmatprep.subr.bf16.mxu0 0
    %419 = vmatpush1.bf16.msra.mxu0 %v399
    %420 = vmatprep.subr.bf16.mxu0 0
    %421 = vmatpush1.bf16.msra.mxu0 %v400
    %422 = vmatprep.subr.bf16.mxu0 0
    %423 = vmatpush1.bf16.msra.mxu0 %v401
    %424 = vmatprep.subr.bf16.mxu0 0
    %425 = vmatpush1.bf16.msra.mxu0 %v402
    %426 = vmatprep.subr.bf16.mxu0 0
    %427 = vmatpush1.bf16.msra.mxu0 %v403
    %428 = vmatprep.subr.bf16.mxu0 0
    %429 = vmatpush1.bf16.msra.mxu0 0
    %430 = vmatprep.subr.bf16.mxu0 0
    %431 = vmatpush1.bf16.msra.mxu0 0
    %432 = vmatprep.subr.bf16.mxu0 0
    %433 = vmatpush1.bf16.msra.mxu0 0
    %434 = vmatprep.subr.bf16.mxu0 0
    %435 = vmatpush1.bf16.msra.mxu0 0
    %436 = vmatprep.subr.bf16.mxu0 0
    %437 = vmatpush1.bf16.msra.mxu0 0
    %438 = vmatprep.subr.bf16.mxu0 0
    %439 = vmatpush1.bf16.msra.mxu0 0
    %440 = vmatprep.subr.bf16.mxu0 0
    %441 = vmatpush1.bf16.msra.mxu0 0
    %442 = vmatprep.subr.bf16.mxu0 0
    %443 = vmatpush1.bf16.msra.mxu0 0
    %444 = vmatprep.mubr.bf16.mxu0 0
    %445 = vmatmul.mubr.bf16.gmra.mrb[0].mxu0 %v359
    %v446 = vpop.f32.mrb[0].mxu0
    %v447 = vadd.f32 %v363, %v446
    %v448 = vpop.f32.mrb[0].mxu0
    %v449 = vpop.f32.mrb[0].mxu0
    %v450 = vpop.f32.mrb[0].mxu0
    %451 = vdwg.mxu0
    %v452 = vmax.f32 %v447, 0.0
    %s453 = scalar_lea.vmem [#allocation5], 256
    %v454 = vld [vmem:[%s453] sm:$0xf]
    %v455 = vld [vmem:[%s453 + $0x4] sm:$0xf]
    %v456 = vld [vmem:[%s453 + $0x8] sm:$0xf]
    %v457 = vld [vmem:[%s453 + $0xc] sm:$0xf]
    %v458 = vld [vmem:[%s453 + $0x10] sm:$0xf]
    %v459 = vld [vmem:[%s453 + $0x14] sm:$0xf]
    %v460 = vld [vmem:[%s453 + $0x18] sm:$0xf]
    %v461 = vld [vmem:[%s453 + $0x1c] sm:$0xf]
    %v462 = vld [vmem:[%s453 + $0x20] sm:$0xf]
    %v463 = vld [vmem:[%s453 + $0x24] sm:$0xf]
    %v464 = vld [vmem:[%s453 + $0x28] sm:$0xf]
    %v465 = vld [vmem:[%s453 + $0x2c] sm:$0xf]
    %v466 = vld [vmem:[%s453 + $0x30] sm:$0xf]
    %v467 = vld [vmem:[%s453 + $0x34] sm:$0xf]
    %v468 = vld [vmem:[%s453 + $0x38] sm:$0xf]
    %v469 = vld [vmem:[%s453 + $0x3c] sm:$0xf]
    %v470 = vld [vmem:[#allocation7 + $0x4] sm:$0x1]
    %v471 = vpack.c.bf16 %v452, %v452
    %v472 = vlaneseq
    %v473 = vshrl.u32 %v472, 7
    %v474 = vsub.s32 0, %v473
    %v475 = vrot.slane %v470, %v474
    %v492 = vunpack.c.l.b16 %v454
    %v493 = vunpack.c.l.b16 %v455
    %v494 = vunpack.c.l.b16 %v456
    %v495 = vunpack.c.l.b16 %v457
    %v496 = vunpack.c.l.b16 %v458
    %v497 = vunpack.c.l.b16 %v459
    %v498 = vunpack.c.l.b16 %v460
    %v499 = vunpack.c.l.b16 %v461
    %v500 = vunpack.c.l.b16 %v462
    %v501 = vunpack.c.l.b16 %v463
    %v502 = vunpack.c.l.b16 %v464
    %v503 = vunpack.c.l.b16 %v465
    %v504 = vunpack.c.l.b16 %v466
    %v505 = vunpack.c.l.b16 %v467
    %v506 = vunpack.c.l.b16 %v468
    %v507 = vunpack.c.l.b16 %v469
    %v508 = vpack.c.b16 %v493, %v492
    %v509 = vpack.c.b16 %v495, %v494
    %v510 = vpack.c.b16 %v497, %v496
    %v511 = vpack.c.b16 %v499, %v498
    %v512 = vpack.c.b16 %v501, %v500
    %v513 = vpack.c.b16 %v503, %v502
    %v514 = vpack.c.b16 %v505, %v504
    %v515 = vpack.c.b16 %v507, %v506
    %524 = vmatprep.subr.bf16.mxu0 0
    %525 = vmatpush1.bf16.msra.mxu0 %v508
    %526 = vmatprep.subr.bf16.mxu0 0
    %527 = vmatpush1.bf16.msra.mxu0 %v509
    %528 = vmatprep.subr.bf16.mxu0 0
    %529 = vmatpush1.bf16.msra.mxu0 %v510
    %530 = vmatprep.subr.bf16.mxu0 0
    %531 = vmatpush1.bf16.msra.mxu0 %v511
    %532 = vmatprep.subr.bf16.mxu0 0
    %533 = vmatpush1.bf16.msra.mxu0 %v512
    %534 = vmatprep.subr.bf16.mxu0 0
    %535 = vmatpush1.bf16.msra.mxu0 %v513
    %536 = vmatprep.subr.bf16.mxu0 0
    %537 = vmatpush1.bf16.msra.mxu0 %v514
    %538 = vmatprep.subr.bf16.mxu0 0
    %539 = vmatpush1.bf16.msra.mxu0 %v515
    %540 = vmatprep.subr.bf16.mxu0 0
    %541 = vmatpush1.bf16.msra.mxu0 0
    %542 = vmatprep.subr.bf16.mxu0 0
    %543 = vmatpush1.bf16.msra.mxu0 0
    %544 = vmatprep.subr.bf16.mxu0 0
    %545 = vmatpush1.bf16.msra.mxu0 0
    %546 = vmatprep.subr.bf16.mxu0 0
    %547 = vmatpush1.bf16.msra.mxu0 0
    %548 = vmatprep.subr.bf16.mxu0 0
    %549 = vmatpush1.bf16.msra.mxu0 0
    %550 = vmatprep.subr.bf16.mxu0 0
    %551 = vmatpush1.bf16.msra.mxu0 0
    %552 = vmatprep.subr.bf16.mxu0 0
    %553 = vmatpush1.bf16.msra.mxu0 0
    %554 = vmatprep.subr.bf16.mxu0 0
    %555 = vmatpush1.bf16.msra.mxu0 0
    %556 = vmatprep.mubr.bf16.mxu0 0
    %557 = vmatmul.mubr.bf16.gmra.mrb[0].mxu0 %v471
    %v558 = vpop.f32.mrb[0].mxu0
    %v559 = vadd.f32 %v475, %v558
    %v560 = vpop.f32.mrb[0].mxu0
    %v561 = vpop.f32.mrb[0].mxu0
    %v562 = vpop.f32.mrb[0].mxu0
    %563 = vdwg.mxu0
    %vm564 = vcmask 64512
    %565 = vst.msk [vmem:[%s4] sm:$0xff] %vm564, %v559
    %s566 = scalar_lea.vmem [#allocation5], 320
    %v567 = vld [vmem:[%s566] sm:$0xf]
    %v568 = vld [vmem:[%s566 + $0x4] sm:$0xf]
    %v569 = vld [vmem:[%s566 + $0x8] sm:$0xf]
    %v570 = vld [vmem:[%s566 + $0xc] sm:$0xf]
    %v571 = vld [vmem:[%s566 + $0x10] sm:$0xf]
    %v572 = vld [vmem:[%s566 + $0x14] sm:$0xf]
    %v573 = vld [vmem:[%s566 + $0x18] sm:$0xf]
    %v574 = vld [vmem:[%s566 + $0x1c] sm:$0xf]
    %v575 = vld [vmem:[%s566 + $0x20] sm:$0xf]
    %v576 = vld [vmem:[%s566 + $0x24] sm:$0xf]
    %v577 = vld [vmem:[%s566 + $0x28] sm:$0xf]
    %v578 = vld [vmem:[%s566 + $0x2c] sm:$0xf]
    %v579 = vld [vmem:[%s566 + $0x30] sm:$0xf]
    %v580 = vld [vmem:[%s566 + $0x34] sm:$0xf]
    %v581 = vld [vmem:[%s566 + $0x38] sm:$0xf]
    %v582 = vld [vmem:[%s566 + $0x3c] sm:$0xf]
    %v583 = vld [vmem:[#allocation7 + $0x5] sm:$0x1]
    %v584 = vpack.c.bf16 %v559, %v559
    %v585 = vlaneseq
    %v586 = vshrl.u32 %v585, 7
    %v587 = vsub.s32 0, %v586
    %v588 = vrot.slane %v583, %v587
    %v605 = vunpack.c.l.b16 %v567
    %v606 = vunpack.c.l.b16 %v568
    %v607 = vunpack.c.l.b16 %v569
    %v608 = vunpack.c.l.b16 %v570
    %v609 = vunpack.c.l.b16 %v571
    %v610 = vunpack.c.l.b16 %v572
    %v611 = vunpack.c.l.b16 %v573
    %v612 = vunpack.c.l.b16 %v574
    %v613 = vunpack.c.l.b16 %v575
    %v614 = vunpack.c.l.b16 %v576
    %v615 = vunpack.c.l.b16 %v577
    %v616 = vunpack.c.l.b16 %v578
    %v617 = vunpack.c.l.b16 %v579
    %v618 = vunpack.c.l.b16 %v580
    %v619 = vunpack.c.l.b16 %v581
    %v620 = vunpack.c.l.b16 %v582
    %v621 = vpack.c.b16 %v606, %v605
    %v622 = vpack.c.b16 %v608, %v607
    %v623 = vpack.c.b16 %v610, %v609
    %v624 = vpack.c.b16 %v612, %v611
    %v625 = vpack.c.b16 %v614, %v613
    %v626 = vpack.c.b16 %v616, %v615
    %v627 = vpack.c.b16 %v618, %v617
    %v628 = vpack.c.b16 %v620, %v619
    %637 = vmatprep.subr.bf16.mxu0 0
    %638 = vmatpush1.bf16.msra.mxu0 %v621
    %639 = vmatprep.subr.bf16.mxu0 0
    %640 = vmatpush1.bf16.msra.mxu0 %v622
    %641 = vmatprep.subr.bf16.mxu0 0
    %642 = vmatpush1.bf16.msra.mxu0 %v623
    %643 = vmatprep.subr.bf16.mxu0 0
    %644 = vmatpush1.bf16.msra.mxu0 %v624
    %645 = vmatprep.subr.bf16.mxu0 0
    %646 = vmatpush1.bf16.msra.mxu0 %v625
    %647 = vmatprep.subr.bf16.mxu0 0
    %648 = vmatpush1.bf16.msra.mxu0 %v626
    %649 = vmatprep.subr.bf16.mxu0 0
    %650 = vmatpush1.bf16.msra.mxu0 %v627
    %651 = vmatprep.subr.bf16.mxu0 0
    %652 = vmatpush1.bf16.msra.mxu0 %v628
    %653 = vmatprep.subr.bf16.mxu0 0
    %654 = vmatpush1.bf16.msra.mxu0 0
    %655 = vmatprep.subr.bf16.mxu0 0
    %656 = vmatpush1.bf16.msra.mxu0 0
    %657 = vmatprep.subr.bf16.mxu0 0
    %658 = vmatpush1.bf16.msra.mxu0 0
    %659 = vmatprep.subr.bf16.mxu0 0
    %660 = vmatpush1.bf16.msra.mxu0 0
    %661 = vmatprep.subr.bf16.mxu0 0
    %662 = vmatpush1.bf16.msra.mxu0 0
    %663 = vmatprep.subr.bf16.mxu0 0
    %664 = vmatpush1.bf16.msra.mxu0 0
    %665 = vmatprep.subr.bf16.mxu0 0
    %666 = vmatpush1.bf16.msra.mxu0 0
    %667 = vmatprep.subr.bf16.mxu0 0
    %668 = vmatpush1.bf16.msra.mxu0 0
    %669 = vmatprep.mubr.bf16.mxu0 0
    %670 = vmatmul.mubr.bf16.gmra.mrb[0].mxu0 %v584
    %v671 = vpop.f32.mrb[0].mxu0
    %v672 = vadd.f32 %v588, %v671
    %v673 = vpop.f32.mrb[0].mxu0
    %v674 = vpop.f32.mrb[0].mxu0
    %v675 = vpop.f32.mrb[0].mxu0
    %676 = vdwg.mxu0
    %v677 = vmax.f32 %v672, 0.0
    %s678 = scalar_lea.vmem [#allocation5], 384
    %v679 = vld [vmem:[%s678] sm:$0xf]
    %v680 = vld [vmem:[%s678 + $0x4] sm:$0xf]
    %v681 = vld [vmem:[%s678 + $0x8] sm:$0xf]
    %v682 = vld [vmem:[%s678 + $0xc] sm:$0xf]
    %v683 = vld [vmem:[%s678 + $0x10] sm:$0xf]
    %v684 = vld [vmem:[%s678 + $0x14] sm:$0xf]
    %v685 = vld [vmem:[%s678 + $0x18] sm:$0xf]
    %v686 = vld [vmem:[%s678 + $0x1c] sm:$0xf]
    %v687 = vld [vmem:[%s678 + $0x20] sm:$0xf]
    %v688 = vld [vmem:[%s678 + $0x24] sm:$0xf]
    %v689 = vld [vmem:[%s678 + $0x28] sm:$0xf]
    %v690 = vld [vmem:[%s678 + $0x2c] sm:$0xf]
    %v691 = vld [vmem:[%s678 + $0x30] sm:$0xf]
    %v692 = vld [vmem:[%s678 + $0x34] sm:$0xf]
    %v693 = vld [vmem:[%s678 + $0x38] sm:$0xf]
    %v694 = vld [vmem:[%s678 + $0x3c] sm:$0xf]
    %v695 = vld [vmem:[#allocation7 + $0x6] sm:$0x1]
    %v696 = vpack.c.bf16 %v677, %v677
    %v697 = vlaneseq
    %v698 = vshrl.u32 %v697, 7
    %v699 = vsub.s32 0, %v698
    %v700 = vrot.slane %v695, %v699
    %v717 = vunpack.c.l.b16 %v679
    %v718 = vunpack.c.l.b16 %v680
    %v719 = vunpack.c.l.b16 %v681
    %v720 = vunpack.c.l.b16 %v682
    %v721 = vunpack.c.l.b16 %v683
    %v722 = vunpack.c.l.b16 %v684
    %v723 = vunpack.c.l.b16 %v685
    %v724 = vunpack.c.l.b16 %v686
    %v725 = vunpack.c.l.b16 %v687
    %v726 = vunpack.c.l.b16 %v688
    %v727 = vunpack.c.l.b16 %v689
    %v728 = vunpack.c.l.b16 %v690
    %v729 = vunpack.c.l.b16 %v691
    %v730 = vunpack.c.l.b16 %v692
    %v731 = vunpack.c.l.b16 %v693
    %v732 = vunpack.c.l.b16 %v694
    %v733 = vpack.c.b16 %v718, %v717
    %v734 = vpack.c.b16 %v720, %v719
    %v735 = vpack.c.b16 %v722, %v721
    %v736 = vpack.c.b16 %v724, %v723
    %v737 = vpack.c.b16 %v726, %v725
    %v738 = vpack.c.b16 %v728, %v727
    %v739 = vpack.c.b16 %v730, %v729
    %v740 = vpack.c.b16 %v732, %v731
    %749 = vmatprep.subr.bf16.mxu0 0
    %750 = vmatpush1.bf16.msra.mxu0 %v733
    %751 = vmatprep.subr.bf16.mxu0 0
    %752 = vmatpush1.bf16.msra.mxu0 %v734
    %753 = vmatprep.subr.bf16.mxu0 0
    %754 = vmatpush1.bf16.msra.mxu0 %v735
    %755 = vmatprep.subr.bf16.mxu0 0
    %756 = vmatpush1.bf16.msra.mxu0 %v736
    %757 = vmatprep.subr.bf16.mxu0 0
    %758 = vmatpush1.bf16.msra.mxu0 %v737
    %759 = vmatprep.subr.bf16.mxu0 0
    %760 = vmatpush1.bf16.msra.mxu0 %v738
    %761 = vmatprep.subr.bf16.mxu0 0
    %762 = vmatpush1.bf16.msra.mxu0 %v739
    %763 = vmatprep.subr.bf16.mxu0 0
    %764 = vmatpush1.bf16.msra.mxu0 %v740
    %765 = vmatprep.subr.bf16.mxu0 0
    %766 = vmatpush1.bf16.msra.mxu0 0
    %767 = vmatprep.subr.bf16.mxu0 0
    %768 = vmatpush1.bf16.msra.mxu0 0
    %769 = vmatprep.subr.bf16.mxu0 0
    %770 = vmatpush1.bf16.msra.mxu0 0
    %771 = vmatprep.subr.bf16.mxu0 0
    %772 = vmatpush1.bf16.msra.mxu0 0
    %773 = vmatprep.subr.bf16.mxu0 0
    %774 = vmatpush1.bf16.msra.mxu0 0
    %775 = vmatprep.subr.bf16.mxu0 0
    %776 = vmatpush1.bf16.msra.mxu0 0
    %777 = vmatprep.subr.bf16.mxu0 0
    %778 = vmatpush1.bf16.msra.mxu0 0
    %779 = vmatprep.subr.bf16.mxu0 0
    %780 = vmatpush1.bf16.msra.mxu0 0
    %781 = vmatprep.mubr.bf16.mxu0 0
    %782 = vmatmul.mubr.bf16.gmra.mrb[0].mxu0 %v696
    %v783 = vpop.f32.mrb[0].mxu0
    %v784 = vadd.f32 %v700, %v783
    %v785 = vpop.f32.mrb[0].mxu0
    %v786 = vpop.f32.mrb[0].mxu0
    %v787 = vpop.f32.mrb[0].mxu0
    %788 = vdwg.mxu0
    %v789 = vmax.f32 %v784, 0.0
    %s790 = scalar_lea.vmem [#allocation5], 448
    %v791 = vld [vmem:[%s790] sm:$0xf]
    %v792 = vld [vmem:[%s790 + $0x4] sm:$0xf]
    %v793 = vld [vmem:[%s790 + $0x8] sm:$0xf]
    %v794 = vld [vmem:[%s790 + $0xc] sm:$0xf]
    %v795 = vld [vmem:[%s790 + $0x10] sm:$0xf]
    %v796 = vld [vmem:[%s790 + $0x14] sm:$0xf]
    %v797 = vld [vmem:[%s790 + $0x18] sm:$0xf]
    %v798 = vld [vmem:[%s790 + $0x1c] sm:$0xf]
    %v799 = vld [vmem:[%s790 + $0x20] sm:$0xf]
    %v800 = vld [vmem:[%s790 + $0x24] sm:$0xf]
    %v801 = vld [vmem:[%s790 + $0x28] sm:$0xf]
    %v802 = vld [vmem:[%s790 + $0x2c] sm:$0xf]
    %v803 = vld [vmem:[%s790 + $0x30] sm:$0xf]
    %v804 = vld [vmem:[%s790 + $0x34] sm:$0xf]
    %v805 = vld [vmem:[%s790 + $0x38] sm:$0xf]
    %v806 = vld [vmem:[%s790 + $0x3c] sm:$0xf]
    %v807 = vld [vmem:[#allocation7 + $0x7] sm:$0x1]
    %v808 = vpack.c.bf16 %v789, %v789
    %v809 = vlaneseq
    %v810 = vshrl.u32 %v809, 7
    %v811 = vsub.s32 0, %v810
    %v812 = vrot.slane %v807, %v811
    %v829 = vunpack.c.l.b16 %v791
    %v830 = vunpack.c.l.b16 %v792
    %v831 = vunpack.c.l.b16 %v793
    %v832 = vunpack.c.l.b16 %v794
    %v833 = vunpack.c.l.b16 %v795
    %v834 = vunpack.c.l.b16 %v796
    %v835 = vunpack.c.l.b16 %v797
    %v836 = vunpack.c.l.b16 %v798
    %v837 = vunpack.c.l.b16 %v799
    %v838 = vunpack.c.l.b16 %v800
    %v839 = vunpack.c.l.b16 %v801
    %v840 = vunpack.c.l.b16 %v802
    %v841 = vunpack.c.l.b16 %v803
    %v842 = vunpack.c.l.b16 %v804
    %v843 = vunpack.c.l.b16 %v805
    %v844 = vunpack.c.l.b16 %v806
    %v845 = vpack.c.b16 %v830, %v829
    %v846 = vpack.c.b16 %v832, %v831
    %v847 = vpack.c.b16 %v834, %v833
    %v848 = vpack.c.b16 %v836, %v835
    %v849 = vpack.c.b16 %v838, %v837
    %v850 = vpack.c.b16 %v840, %v839
    %v851 = vpack.c.b16 %v842, %v841
    %v852 = vpack.c.b16 %v844, %v843
    %861 = vmatprep.subr.bf16.mxu0 0
    %862 = vmatpush1.bf16.msra.mxu0 %v845
    %863 = vmatprep.subr.bf16.mxu0 0
    %864 = vmatpush1.bf16.msra.mxu0 %v846
    %865 = vmatprep.subr.bf16.mxu0 0
    %866 = vmatpush1.bf16.msra.mxu0 %v847
    %867 = vmatprep.subr.bf16.mxu0 0
    %868 = vmatpush1.bf16.msra.mxu0 %v848
    %869 = vmatprep.subr.bf16.mxu0 0
    %870 = vmatpush1.bf16.msra.mxu0 %v849
    %871 = vmatprep.subr.bf16.mxu0 0
    %872 = vmatpush1.bf16.msra.mxu0 %v850
    %873 = vmatprep.subr.bf16.mxu0 0
    %874 = vmatpush1.bf16.msra.mxu0 %v851
    %875 = vmatprep.subr.bf16.mxu0 0
    %876 = vmatpush1.bf16.msra.mxu0 %v852
    %877 = vmatprep.subr.bf16.mxu0 0
    %878 = vmatpush1.bf16.msra.mxu0 0
    %879 = vmatprep.subr.bf16.mxu0 0
    %880 = vmatpush1.bf16.msra.mxu0 0
    %881 = vmatprep.subr.bf16.mxu0 0
    %882 = vmatpush1.bf16.msra.mxu0 0
    %883 = vmatprep.subr.bf16.mxu0 0
    %884 = vmatpush1.bf16.msra.mxu0 0
    %885 = vmatprep.subr.bf16.mxu0 0
    %886 = vmatpush1.bf16.msra.mxu0 0
    %887 = vmatprep.subr.bf16.mxu0 0
    %888 = vmatpush1.bf16.msra.mxu0 0
    %889 = vmatprep.subr.bf16.mxu0 0
    %890 = vmatpush1.bf16.msra.mxu0 0
    %891 = vmatprep.subr.bf16.mxu0 0
    %892 = vmatpush1.bf16.msra.mxu0 0
    %893 = vmatprep.mubr.bf16.mxu0 0
    %894 = vmatmul.mubr.bf16.gmra.mrb[0].mxu0 %v808
    %v895 = vpop.f32.mrb[0].mxu0
    %v896 = vadd.f32 %v812, %v895
    %v897 = vpop.f32.mrb[0].mxu0
    %v898 = vpop.f32.mrb[0].mxu0
    %v899 = vpop.f32.mrb[0].mxu0
    %900 = vdwg.mxu0
    %v901 = vmax.f32 %v896, 0.0
    %s902 = scalar_lea.vmem [#allocation5], 512
    %v903 = vld [vmem:[%s902] sm:$0xf]
    %v904 = vld [vmem:[%s902 + $0x4] sm:$0xf]
    %v905 = vld [vmem:[%s902 + $0x8] sm:$0xf]
    %v906 = vld [vmem:[%s902 + $0xc] sm:$0xf]
    %v907 = vld [vmem:[%s902 + $0x10] sm:$0xf]
    %v908 = vld [vmem:[%s902 + $0x14] sm:$0xf]
    %v909 = vld [vmem:[%s902 + $0x18] sm:$0xf]
    %v910 = vld [vmem:[%s902 + $0x1c] sm:$0xf]
    %v911 = vld [vmem:[%s902 + $0x20] sm:$0xf]
    %v912 = vld [vmem:[%s902 + $0x24] sm:$0xf]
    %v913 = vld [vmem:[%s902 + $0x28] sm:$0xf]
    %v914 = vld [vmem:[%s902 + $0x2c] sm:$0xf]
    %v915 = vld [vmem:[%s902 + $0x30] sm:$0xf]
    %v916 = vld [vmem:[%s902 + $0x34] sm:$0xf]
    %v917 = vld [vmem:[%s902 + $0x38] sm:$0xf]
    %v918 = vld [vmem:[%s902 + $0x3c] sm:$0xf]
    %v919 = vld [vmem:[#allocation7 + $0x8] sm:$0x1]
    %v920 = vpack.c.bf16 %v901, %v901
    %v921 = vlaneseq
    %v922 = vshrl.u32 %v921, 7
    %v923 = vsub.s32 0, %v922
    %v924 = vrot.slane %v919, %v923
    %v941 = vunpack.c.l.b16 %v903
    %v942 = vunpack.c.l.b16 %v904
    %v943 = vunpack.c.l.b16 %v905
    %v944 = vunpack.c.l.b16 %v906
    %v945 = vunpack.c.l.b16 %v907
    %v946 = vunpack.c.l.b16 %v908
    %v947 = vunpack.c.l.b16 %v909
    %v948 = vunpack.c.l.b16 %v910
    %v949 = vunpack.c.l.b16 %v911
    %v950 = vunpack.c.l.b16 %v912
    %v951 = vunpack.c.l.b16 %v913
    %v952 = vunpack.c.l.b16 %v914
    %v953 = vunpack.c.l.b16 %v915
    %v954 = vunpack.c.l.b16 %v916
    %v955 = vunpack.c.l.b16 %v917
    %v956 = vunpack.c.l.b16 %v918
    %v957 = vpack.c.b16 %v942, %v941
    %v958 = vpack.c.b16 %v944, %v943
    %v959 = vpack.c.b16 %v946, %v945
    %v960 = vpack.c.b16 %v948, %v947
    %v961 = vpack.c.b16 %v950, %v949
    %v962 = vpack.c.b16 %v952, %v951
    %v963 = vpack.c.b16 %v954, %v953
    %v964 = vpack.c.b16 %v956, %v955
    %973 = vmatprep.subr.bf16.mxu0 0
    %974 = vmatpush1.bf16.msra.mxu0 %v957
    %975 = vmatprep.subr.bf16.mxu0 0
    %976 = vmatpush1.bf16.msra.mxu0 %v958
    %977 = vmatprep.subr.bf16.mxu0 0
    %978 = vmatpush1.bf16.msra.mxu0 %v959
    %979 = vmatprep.subr.bf16.mxu0 0
    %980 = vmatpush1.bf16.msra.mxu0 %v960
    %981 = vmatprep.subr.bf16.mxu0 0
    %982 = vmatpush1.bf16.msra.mxu0 %v961
    %983 = vmatprep.subr.bf16.mxu0 0
    %984 = vmatpush1.bf16.msra.mxu0 %v962
    %985 = vmatprep.subr.bf16.mxu0 0
    %986 = vmatpush1.bf16.msra.mxu0 %v963
    %987 = vmatprep.subr.bf16.mxu0 0
    %988 = vmatpush1.bf16.msra.mxu0 %v964
    %989 = vmatprep.subr.bf16.mxu0 0
    %990 = vmatpush1.bf16.msra.mxu0 0
    %991 = vmatprep.subr.bf16.mxu0 0
    %992 = vmatpush1.bf16.msra.mxu0 0
    %993 = vmatprep.subr.bf16.mxu0 0
    %994 = vmatpush1.bf16.msra.mxu0 0
    %995 = vmatprep.subr.bf16.mxu0 0
    %996 = vmatpush1.bf16.msra.mxu0 0
    %997 = vmatprep.subr.bf16.mxu0 0
    %998 = vmatpush1.bf16.msra.mxu0 0
    %999 = vmatprep.subr.bf16.mxu0 0
    %1000 = vmatpush1.bf16.msra.mxu0 0
    %1001 = vmatprep.subr.bf16.mxu0 0
    %1002 = vmatpush1.bf16.msra.mxu0 0
    %1003 = vmatprep.subr.bf16.mxu0 0
    %1004 = vmatpush1.bf16.msra.mxu0 0
    %1005 = vmatprep.mubr.bf16.mxu0 0
    %1006 = vmatmul.mubr.bf16.gmra.mrb[0].mxu0 %v920
    %v1007 = vpop.f32.mrb[0].mxu0
    %v1008 = vadd.f32 %v924, %v1007
    %v1009 = vpop.f32.mrb[0].mxu0
    %v1010 = vpop.f32.mrb[0].mxu0
    %v1011 = vpop.f32.mrb[0].mxu0
    %1012 = vdwg.mxu0
    %v1013 = vmax.f32 %v1008, 0.0
    %s1014 = scalar_lea.vmem [#allocation5], 576
    %v1015 = vld [vmem:[%s1014] sm:$0xf]
    %v1016 = vld [vmem:[%s1014 + $0x4] sm:$0xf]
    %v1017 = vld [vmem:[%s1014 + $0x8] sm:$0xf]
    %v1018 = vld [vmem:[%s1014 + $0xc] sm:$0xf]
    %v1019 = vld [vmem:[%s1014 + $0x10] sm:$0xf]
    %v1020 = vld [vmem:[%s1014 + $0x14] sm:$0xf]
    %v1021 = vld [vmem:[%s1014 + $0x18] sm:$0xf]
    %v1022 = vld [vmem:[%s1014 + $0x1c] sm:$0xf]
    %v1023 = vld [vmem:[%s1014 + $0x20] sm:$0xf]
    %v1024 = vld [vmem:[%s1014 + $0x24] sm:$0xf]
    %v1025 = vld [vmem:[%s1014 + $0x28] sm:$0xf]
    %v1026 = vld [vmem:[%s1014 + $0x2c] sm:$0xf]
    %v1027 = vld [vmem:[%s1014 + $0x30] sm:$0xf]
    %v1028 = vld [vmem:[%s1014 + $0x34] sm:$0xf]
    %v1029 = vld [vmem:[%s1014 + $0x38] sm:$0xf]
    %v1030 = vld [vmem:[%s1014 + $0x3c] sm:$0xf]
    %v1031 = vld [vmem:[#allocation7 + $0x9] sm:$0x1]
    %v1032 = vpack.c.bf16 %v1013, %v1013
    %v1033 = vlaneseq
    %v1034 = vshrl.u32 %v1033, 7
    %v1035 = vsub.s32 0, %v1034
    %v1036 = vrot.slane %v1031, %v1035
    %v1053 = vunpack.c.l.b16 %v1015
    %v1054 = vunpack.c.l.b16 %v1016
    %v1055 = vunpack.c.l.b16 %v1017
    %v1056 = vunpack.c.l.b16 %v1018
    %v1057 = vunpack.c.l.b16 %v1019
    %v1058 = vunpack.c.l.b16 %v1020
    %v1059 = vunpack.c.l.b16 %v1021
    %v1060 = vunpack.c.l.b16 %v1022
    %v1061 = vunpack.c.l.b16 %v1023
    %v1062 = vunpack.c.l.b16 %v1024
    %v1063 = vunpack.c.l.b16 %v1025
    %v1064 = vunpack.c.l.b16 %v1026
    %v1065 = vunpack.c.l.b16 %v1027
    %v1066 = vunpack.c.l.b16 %v1028
    %v1067 = vunpack.c.l.b16 %v1029
    %v1068 = vunpack.c.l.b16 %v1030
    %v1069 = vpack.c.b16 %v1054, %v1053
    %v1070 = vpack.c.b16 %v1056, %v1055
    %v1071 = vpack.c.b16 %v1058, %v1057
    %v1072 = vpack.c.b16 %v1060, %v1059
    %v1073 = vpack.c.b16 %v1062, %v1061
    %v1074 = vpack.c.b16 %v1064, %v1063
    %v1075 = vpack.c.b16 %v1066, %v1065
    %v1076 = vpack.c.b16 %v1068, %v1067
    %1085 = vmatprep.subr.bf16.mxu0 0
    %1086 = vmatpush1.bf16.msra.mxu0 %v1069
    %1087 = vmatprep.subr.bf16.mxu0 0
    %1088 = vmatpush1.bf16.msra.mxu0 %v1070
    %1089 = vmatprep.subr.bf16.mxu0 0
    %1090 = vmatpush1.bf16.msra.mxu0 %v1071
    %1091 = vmatprep.subr.bf16.mxu0 0
    %1092 = vmatpush1.bf16.msra.mxu0 %v1072
    %1093 = vmatprep.subr.bf16.mxu0 0
    %1094 = vmatpush1.bf16.msra.mxu0 %v1073
    %1095 = vmatprep.subr.bf16.mxu0 0
    %1096 = vmatpush1.bf16.msra.mxu0 %v1074
    %1097 = vmatprep.subr.bf16.mxu0 0
    %1098 = vmatpush1.bf16.msra.mxu0 %v1075
    %1099 = vmatprep.subr.bf16.mxu0 0
    %1100 = vmatpush1.bf16.msra.mxu0 %v1076
    %1101 = vmatprep.subr.bf16.mxu0 0
    %1102 = vmatpush1.bf16.msra.mxu0 0
    %1103 = vmatprep.subr.bf16.mxu0 0
    %1104 = vmatpush1.bf16.msra.mxu0 0
    %1105 = vmatprep.subr.bf16.mxu0 0
    %1106 = vmatpush1.bf16.msra.mxu0 0
    %1107 = vmatprep.subr.bf16.mxu0 0
    %1108 = vmatpush1.bf16.msra.mxu0 0
    %1109 = vmatprep.subr.bf16.mxu0 0
    %1110 = vmatpush1.bf16.msra.mxu0 0
    %1111 = vmatprep.subr.bf16.mxu0 0
    %1112 = vmatpush1.bf16.msra.mxu0 0
    %1113 = vmatprep.subr.bf16.mxu0 0
    %1114 = vmatpush1.bf16.msra.mxu0 0
    %1115 = vmatprep.subr.bf16.mxu0 0
    %1116 = vmatpush1.bf16.msra.mxu0 0
    %1117 = vmatprep.mubr.bf16.mxu0 0
    %1118 = vmatmul.mubr.bf16.gmra.mrb[0].mxu0 %v1032
    %v1119 = vpop.f32.mrb[0].mxu0
    %v1120 = vadd.f32 %v1036, %v1119
    %v1121 = vpop.f32.mrb[0].mxu0
    %v1122 = vpop.f32.mrb[0].mxu0
    %v1123 = vpop.f32.mrb[0].mxu0
    %1124 = vdwg.mxu0
    %1125 = vst.msk [vmem:[#allocation8] sm:$0xff] %vm72, %v1120
    // Predicated region
    $region26: #{_fwd.1} parent=1 // pred_check
      _
    $region27: #{_fwd.1} parent=1 // pred_check_branch
      %1127 = sbr.rel (0) target = $region29
    $region28: #{_fwd.1} parent=1 // pred_region
      %s1129 = ssub.s32 128, 128
      %1130 = vsyncadd [#allocation4], %s1129
      %s1132 = sshll.u32 [#allocation8], 4
      %s1133 = int_to_ptr.vmem [resolvable:$true] %s1132
      %1135 = dma.vmem_to_hbm [thread:$0]  %s1133, 128, %s3, [#allocation4]
    $region29: #{_fwd.1} parent=1 // pred_fallthru
      _
    // Predicated region
    $region30: #{_fwd.1} parent=1 // pred_check
      _
    $region31: #{_fwd.1} parent=1 // pred_check_branch
      %1137 = sbr.rel (0) target = $region33
    $region32: #{_fwd.1} parent=1 // pred_region
      _
    $region33: #{_fwd.1} parent=1 // pred_fallthru
      _
    // Predicated region
    $region34: #{_fwd.1} parent=1 // pred_check
      _
    $region35: #{_fwd.1} parent=1 // pred_check_branch
      %1139 = sbr.rel (0) target = $region37
    $region36: #{_fwd.1} parent=1 // pred_region
      %1140 = dma.done [#allocation4], 128
    $region37: #{_fwd.1} parent=1 // pred_fallthru
      _
    // Predicated region
    $region38: #{_fwd.1} parent=1 // pred_check
      _
    $region39: #{_fwd.1} parent=1 // pred_check_branch
      %1142 = sbr.rel (0) target = $region41
    $region40: #{_fwd.1} parent=1 // pred_region
      _
    $region41: #{_fwd.1} parent=1 // pred_fallthru
      _
    %1143 = vsyncpa [#allocation3], 1
    %1144 = vsyncpa [#allocation6], 1
    %1145 = vsyncpa [#allocation4], 1

</llo_original>
